<compile_context>
chip_gen: v5e
topology: v5e:2x2
jax: 0.10.0
libtpu: 0.0.40
codegen_flags: <defaults>
</compile_context>

<pallas_src>
import functools

import jax
import jax.numpy as jnp
from jax import lax
from jax.experimental import pallas as pl
from jax.experimental.pallas import tpu as pltpu


# ----------------------------------------------------------------------------
# In-kernel helpers (plain jnp/lax ops: portable to compiled Mosaic & interpret)
# ----------------------------------------------------------------------------
def _conv3x3(img, w2d, H, W):
    """3x3 same-padding conv over a lane-flat image batch, as one MXU dot.

    img : (Cin, L) f32, L = n_imgs*H*W, lane p = img_idx*H*W + row*W + col.
    w2d : (Cout, 9*Cin) bf16, column = (ky*3 + kx)*Cin + ci   (tap-major).
    returns (Cout, L) f32.
    """
    Cin, L = img.shape
    assert H & (H - 1) == 0 and W & (W - 1) == 0, "H, W must be powers of two"
    wshift = W.bit_length() - 1
    pos = lax.broadcasted_iota(jnp.int32, (1, L), 1)
    col = jnp.bitwise_and(pos, W - 1)
    row = jnp.bitwise_and(jnp.right_shift(pos, wshift), H - 1)

    taps = []
    for ky in range(3):
        dy = ky - 1
        for kx in range(3):
            dx = kx - 1
            s = dy * W + dx
            if s > 0:
                shifted = jnp.concatenate(
                    [img[:, s:], jnp.zeros((Cin, s), img.dtype)], axis=-1)
            elif s < 0:
                shifted = jnp.concatenate(
                    [jnp.zeros((Cin, -s), img.dtype), img[:, :L + s]], axis=-1)
            else:
                shifted = img
            valid = ((row + dy >= 0) & (row + dy < H) &
                     (col + dx >= 0) & (col + dx < W))
            taps.append(jnp.where(valid, shifted, 0.0))
    patches = jnp.concatenate(taps, axis=0).astype(jnp.bfloat16)      # (9*Cin, L)
    return jnp.dot(w2d, patches, preferred_element_type=jnp.float32)  # (Cout, L)


def _leaky(h, slope):
    if slope == 0.0:
        return jnp.maximum(h, 0.0)
    return jnp.where(h >= 0.0, h, slope * h)


def _pool_fc(h, fcT, n_imgs, HW):
    """Global average pool per image, then FC: (C, n*HW) -> (Dout, n)."""
    cols = [jnp.sum(h[:, i * HW:(i + 1) * HW], axis=-1, keepdims=True)
            for i in range(n_imgs)]
    pooled = (cols[0] if n_imgs == 1 else jnp.concatenate(cols, axis=-1)) * (1.0 / HW)
    return jnp.dot(fcT, pooled, preferred_element_type=jnp.float32)


def _bcast_per_image(v, n_imgs, HW):
    """(R, n) per-image values -> (R, n*HW): column i broadcast over image i's lanes."""
    cols = [jnp.broadcast_to(v[:, i:i + 1], (v.shape[0], HW)) for i in range(n_imgs)]
    return cols[0] if n_imgs == 1 else jnp.concatenate(cols, axis=-1)


# ----------------------------------------------------------------------------
# Fused Pallas kernels (one launch per mode)
# ----------------------------------------------------------------------------
def _eval_kernel(y_ref, th_ref, th2_ref, zT_ref, gzT_ref, gdw_ref, dfc_ref,
                 pred_ref, *, N, H, W):
    """Eval path: G(y,z) -> theta-mix -> 2nd corruption -> D(y) & D(y_tilde)."""
    HW = H * W
    C = y_ref.shape[0]
    y = y_ref[...]
    th = th_ref[...]
    gdw = gdw_ref[...]                                   # (2C, 9C): [G conv ; D conv]

    # One tap build + one MXU push of taps(y) serves both G's and D's conv.
    h_y = _conv3x3(y, gdw, H, W)                         # (2C, N*HW)
    zb = jnp.dot(gzT_ref[...], zT_ref[...], preferred_element_type=jnp.float32)
    x_hat_orig = jnp.tanh(h_y[:C] + _bcast_per_image(zb, N, HW))
    x_hat = x_hat_orig * th + y * (1.0 - th)             # corruption(.,theta) + theta mix
    y_tilde = x_hat * th2_ref[...]                       # second (internal) corruption

    d_conv_yt = _conv3x3(y_tilde, gdw[C:], H, W)         # D conv on y_tilde
    hd = _leaky(jnp.concatenate([h_y[C:], d_conv_yt], axis=-1), 0.2)
    pred_ref[...] = _pool_fc(hd, dfc_ref[...], 2 * N, HW)    # (1, 2N): [D(y) | D(y_tilde)]


def _train_kernel(y_ref, th_ref, th2_ref, zT_ref, gzT_ref, gw_ref, ew_ref, efc_ref,
                  dw_ref, dfc_ref, imgs_ref, zall_ref, pred_ref, *, N, H, W):
    """train_G path: G, E(x_hat)&E(y), recon-G, D(y_tilde)&D(y_recon) — fully fused."""
    HW = H * W
    y = y_ref[...]
    th = th_ref[...]

    # x_hat_orig = G(y, z); x_hat = corrupt(x_hat_orig, theta)*theta + y*(1-theta)
    zb = jnp.dot(gzT_ref[...], zT_ref[...], preferred_element_type=jnp.float32)
    x_hat_orig = jnp.tanh(_conv3x3(y, gw_ref[...], H, W) + _bcast_per_image(zb, N, HW))
    x_hat = x_hat_orig * th + y * (1.0 - th)
    y_tilde = x_hat * th2_ref[...]

    # E(x_hat) and E(y): shared weights, batched along the lane axis.
    he = jnp.maximum(
        _conv3x3(jnp.concatenate([x_hat, y], axis=-1), ew_ref[...], H, W), 0.0)
    z_all = _pool_fc(he, efc_ref[...], 2 * N, HW)        # (NZ, 2N): [z_hat | z_recon]
    z_recon = z_all[:, N:]

    # x_recon = G(y_tilde, z_recon); y_recon = corruption(x_recon, theta) = x_recon*theta
    zb2 = jnp.dot(gzT_ref[...], z_recon, preferred_element_type=jnp.float32)
    x_recon = jnp.tanh(_conv3x3(y_tilde, gw_ref[...], H, W) + _bcast_per_image(zb2, N, HW))
    y_recon = x_recon * th

    # D(y_tilde) and D(y_recon): shared weights, batched along the lane axis.
    hd = _leaky(
        _conv3x3(jnp.concatenate([y_tilde, y_recon], axis=-1), dw_ref[...], H, W), 0.2)
    pred_ref[...] = _pool_fc(hd, dfc_ref[...], 2 * N, HW)    # (1, 2N): [D(y_tilde) | D(y_recon)]
    zall_ref[...] = z_all
    imgs_ref[...] = jnp.concatenate([x_hat, y_tilde, y_recon], axis=0)  # packed (3C, N*HW)


# ----------------------------------------------------------------------------
# Synthetic G / D / E parameters (kernel-ready layouts, prepared once)
# ----------------------------------------------------------------------------
def _conv_to_tapmajor(w):
    # (Cout, Cin, 3, 3) -> (Cout, 9*Cin), column = (ky*3 + kx)*Cin + ci
    cout, cin = w.shape[0], w.shape[1]
    return jnp.transpose(w, (0, 2, 3, 1)).reshape(cout, 9 * cin)


def init_params(key, C, NZ):
    ks = jax.random.split(key, 6)
    s = 0.1
    g_conv = s * jax.random.normal(ks[0], (C, C, 3, 3), jnp.float32)
    g_z = s * jax.random.normal(ks[1], (NZ, C), jnp.float32)
    e_conv = s * jax.random.normal(ks[2], (C, C, 3, 3), jnp.float32)
    e_fc = s * jax.random.normal(ks[3], (C, NZ), jnp.float32)
    d_conv = s * jax.random.normal(ks[4], (C, C, 3, 3), jnp.float32)
    d_fc = s * jax.random.normal(ks[5], (C, 1), jnp.float32)

    g_w = _conv_to_tapmajor(g_conv).astype(jnp.bfloat16)
    d_w = _conv_to_tapmajor(d_conv).astype(jnp.bfloat16)
    return dict(
        g_w=g_w,                                             # (C, 9C) bf16
        g_zT=g_z.T.astype(jnp.float32),                      # (C, NZ)
        e_w=_conv_to_tapmajor(e_conv).astype(jnp.bfloat16),  # (C, 9C) bf16
        e_fcT=e_fc.T.astype(jnp.float32),                    # (NZ, C)
        d_w=d_w,                                             # (C, 9C) bf16
        d_fcT=d_fc.T.astype(jnp.float32),                    # (1, C)
        gd_w=jnp.concatenate([g_w, d_w], axis=0),            # (2C, 9C): stacked for eval
    )


# ----------------------------------------------------------------------------
# G_D_E forward
# ----------------------------------------------------------------------------
def g_d_e_forward(params, y, x=None, z=None, theta=None, label=None, train_G=False,
                  lambda_z=1.0, lambda_L1=1.0, lambda_gen_2=0.0):
    # TODO(synk): label conditioning of G/D is unspecified in the reference wrapper; ignored.
    # TODO(synk): torch.set_grad_enabled / .detach() gradient semantics are not replicated
    #             (forward-only port; forward values match, grads would not).
    del x, label
    N, C, H, W = y.shape
    HW = H * W
    NZ = z.shape[1]

    theta = theta.astype(bool)
    y_flat = jnp.transpose(y.astype(jnp.float32), (1, 0, 2, 3)).reshape(C, N * HW)
    th_flat = jnp.transpose(theta.astype(jnp.float32), (1, 0, 2, 3)).reshape(C, N * HW)
    # Deterministic synthetic "second corruption" mask (reference's corruption() samples
    # its own mask when called without theta); fixed key -> same mask every call.
    th2_flat = jax.random.bernoulli(
        jax.random.PRNGKey(42), 0.7, (C, N * HW)).astype(jnp.float32)
    zT = z.astype(jnp.float32).T                                     # (NZ, N)

    vmem = pl.BlockSpec(memory_space=pltpu.MemorySpace.VMEM)

    if not train_G:
        pred = pl.pallas_call(
            functools.partial(_eval_kernel, N=N, H=H, W=W),
            out_shape=jax.ShapeDtypeStruct((1, 2 * N), jnp.float32),
            in_specs=[vmem] * 7,
            out_specs=vmem,
        )(y_flat, th_flat, th2_flat, zT, params["g_zT"], params["gd_w"], params["d_fcT"])
        pred_real = pred[:, :N].T                                    # D(y)        -> (N, 1)
        pred_fake = pred[:, N:].T                                    # D(y_tilde)  -> (N, 1)
        return (pred_real, pred_fake)

    # ---------------- train_G branch: one fused launch ----------------
    imgs, z_all, pred = pl.pallas_call(
        functools.partial(_train_kernel, N=N, H=H, W=W),
        out_shape=(jax.ShapeDtypeStruct((3 * C, N * HW), jnp.float32),
                   jax.ShapeDtypeStruct((NZ, 2 * N), jnp.float32),
                   jax.ShapeDtypeStruct((1, 2 * N), jnp.float32)),
        in_specs=[vmem] * 10,
        out_specs=(vmem, vmem, vmem),
    )(y_flat, th_flat, th2_flat, zT, params["g_zT"], params["g_w"],
      params["e_w"], params["e_fcT"], params["d_w"], params["d_fcT"])

    def unflat(rows):                                                # (C, N*HW) -> (N,C,H,W)
        return jnp.transpose(rows.reshape(C, N, H, W), (1, 0, 2, 3))

    x_hat = unflat(imgs[:C])
    y_tilde = unflat(imgs[C:2 * C])
    need_zhat = lambda_z > 0
    need_recon = (lambda_L1 > 0.0) or (lambda_gen_2 > 0)

    z_hat = z_all[:, :N].T if need_zhat else None                    # E(x_hat)   -> (N, NZ)
    y_recon = unflat(imgs[2 * C:]) if need_recon else None
    pred_fake = pred[:, :N].T                                        # D(y_tilde) -> (N, 1)
    pred_fake_recon = pred[:, N:].T if (lambda_gen_2 and need_recon) else None
    # TODO(synk): matplotlib sample visualization (1% random imshow) omitted —
    #             host-side plotting has no Pallas equivalent.
    return (pred_fake, pred_fake_recon, y_recon, z_hat, x_hat, y_tilde)


# ----------------------------------------------------------------------------
if __name__ == "__main__":
    N, C, H, W, NZ = 2, 4, 16, 16, 8
    key = jax.random.PRNGKey(0)
    k1, k2, k3, k4 = jax.random.split(key, 4)

    y = jax.random.normal(k1, (N, C, H, W), jnp.float32)
    z = jax.random.normal(k2, (N, NZ), jnp.float32)
    theta = jax.random.uniform(k3, (N, C, H, W)) > 0.5
    params = init_params(k4, C, NZ)

    fwd_eval = jax.jit(lambda p, yy, zz, th: g_d_e_forward(p, yy, z=zz, theta=th, train_G=False))
    fwd_train = jax.jit(lambda p, yy, zz, th: g_d_e_forward(p, yy, z=zz, theta=th, train_G=True))

    # default path: train_G=False -> (pred_real, pred_fake)
    pred_real, pred_fake = fwd_eval(params, y, z, theta)
    # generator-training path: train_G=True (lambda_gen_2=0 -> pred_fake_recon is None)
    outs = fwd_train(params, y, z, theta)

    jax.block_until_ready((pred_real, pred_fake, outs))
    assert pred_real.shape == (N, 1) and pred_fake.shape == (N, 1)
    assert outs[0].shape == (N, 1)
    assert outs[1] is None
    assert outs[2].shape == (N, C, H, W)
    assert outs[3].shape == (N, NZ)
    assert outs[4].shape == (N, C, H, W) and outs[5].shape == (N, C, H, W)
    assert bool(jnp.isfinite(pred_real).all()) and bool(jnp.isfinite(outs[4]).all())
    print("KERNEL_OK")
</pallas_src>

<mosaic_0001>
module attributes {stable_mosaic.version = 11 : i64} {
  func.func @_eval_kernel(%arg0: memref<4x512xf32, #tpu.memory_space<vmem>>, %arg1: memref<4x512xf32, #tpu.memory_space<vmem>>, %arg2: memref<4x512xf32, #tpu.memory_space<vmem>>, %arg3: memref<8x2xf32, #tpu.memory_space<vmem>>, %arg4: memref<4x8xf32, #tpu.memory_space<vmem>>, %arg5: memref<8x36xbf16, #tpu.memory_space<vmem>>, %arg6: memref<1x4xf32, #tpu.memory_space<vmem>>, %arg7: memref<1x4xf32, #tpu.memory_space<vmem>>) attributes {dimension_semantics = [], scalar_prefetch = 0 : i64, scratch_operands = 0 : i64, tpu.core_type = #tpu.core_type<tc>} {
    %c0 = arith.constant 0 : index
    %c0_0 = arith.constant 0 : index
    %0 = vector.load %arg0[%c0, %c0_0] : memref<4x512xf32, #tpu.memory_space<vmem>>, vector<4x512xf32>
    %c0_1 = arith.constant 0 : index
    %c0_2 = arith.constant 0 : index
    %1 = vector.load %arg1[%c0_1, %c0_2] : memref<4x512xf32, #tpu.memory_space<vmem>>, vector<4x512xf32>
    %c0_3 = arith.constant 0 : index
    %c0_4 = arith.constant 0 : index
    %2 = vector.load %arg5[%c0_3, %c0_4] : memref<8x36xbf16, #tpu.memory_space<vmem>>, vector<8x36xbf16>
    %3 = tpu.iota {dimensions = array<i32: 1>} : vector<1x512xi32>
    %c15_i32 = arith.constant 15 : i32
    %4 = vector.broadcast %c15_i32 : i32 to vector<1x512xi32>
    %5 = arith.andi %3, %4 : vector<1x512xi32>
    %c4_i32 = arith.constant 4 : i32
    %6 = vector.broadcast %c4_i32 : i32 to vector<1x512xi32>
    %7 = arith.shrsi %3, %6 : vector<1x512xi32>
    %c15_i32_5 = arith.constant 15 : i32
    %8 = vector.broadcast %c15_i32_5 : i32 to vector<1x512xi32>
    %9 = arith.andi %7, %8 : vector<1x512xi32>
    %cst = arith.constant 0.000000e+00 : f32
    %10 = vector.broadcast %cst : f32 to vector<4x17xf32>
    %11 = vector.extract_strided_slice %0 {offsets = [0, 0], sizes = [4, 495], strides = [1, 1]} : vector<4x512xf32> to vector<4x495xf32>
    %12 = tpu.concatenate %10, %11 in 1 : vector<4x17xf32>, vector<4x495xf32> -> vector<4x512xf32>
    %c-1_i32 = arith.constant -1 : i32
    %13 = vector.broadcast %c-1_i32 : i32 to vector<1x512xi32>
    %14 = arith.addi %9, %13 : vector<1x512xi32>
    %c0_i32 = arith.constant 0 : i32
    %15 = vector.broadcast %c0_i32 : i32 to vector<1x512xi32>
    %16 = arith.cmpi sge, %14, %15 : vector<1x512xi32>
    %c-1_i32_6 = arith.constant -1 : i32
    %17 = vector.broadcast %c-1_i32_6 : i32 to vector<1x512xi32>
    %18 = arith.addi %9, %17 : vector<1x512xi32>
    %c16_i32 = arith.constant 16 : i32
    %19 = vector.broadcast %c16_i32 : i32 to vector<1x512xi32>
    %20 = arith.cmpi slt, %18, %19 : vector<1x512xi32>
    %21 = arith.andi %16, %20 : vector<1x512xi1>
    %c-1_i32_7 = arith.constant -1 : i32
    %22 = vector.broadcast %c-1_i32_7 : i32 to vector<1x512xi32>
    %23 = arith.addi %5, %22 : vector<1x512xi32>
    %c0_i32_8 = arith.constant 0 : i32
    %24 = vector.broadcast %c0_i32_8 : i32 to vector<1x512xi32>
    %25 = arith.cmpi sge, %23, %24 : vector<1x512xi32>
    %26 = arith.andi %21, %25 : vector<1x512xi1>
    %c-1_i32_9 = arith.constant -1 : i32
    %27 = vector.broadcast %c-1_i32_9 : i32 to vector<1x512xi32>
    %28 = arith.addi %5, %27 : vector<1x512xi32>
    %c16_i32_10 = arith.constant 16 : i32
    %29 = vector.broadcast %c16_i32_10 : i32 to vector<1x512xi32>
    %30 = arith.cmpi slt, %28, %29 : vector<1x512xi32>
    %31 = arith.andi %26, %30 : vector<1x512xi1>
    %cst_11 = arith.constant 0.000000e+00 : f32
    %32 = vector.shape_cast %31 : vector<1x512xi1> to vector<1x512xi1>
    %33 = vector.broadcast %32 : vector<1x512xi1> to vector<4x512xi1>
    %34 = vector.broadcast %cst_11 : f32 to vector<4x512xf32>
    %35 = arith.select %33, %12, %34 : vector<4x512xi1>, vector<4x512xf32>
    %cst_12 = arith.constant 0.000000e+00 : f32
    %36 = vector.broadcast %cst_12 : f32 to vector<4x16xf32>
    %37 = vector.extract_strided_slice %0 {offsets = [0, 0], sizes = [4, 496], strides = [1, 1]} : vector<4x512xf32> to vector<4x496xf32>
    %38 = tpu.concatenate %36, %37 in 1 : vector<4x16xf32>, vector<4x496xf32> -> vector<4x512xf32>
    %c-1_i32_13 = arith.constant -1 : i32
    %39 = vector.broadcast %c-1_i32_13 : i32 to vector<1x512xi32>
    %40 = arith.addi %9, %39 : vector<1x512xi32>
    %c0_i32_14 = arith.constant 0 : i32
    %41 = vector.broadcast %c0_i32_14 : i32 to vector<1x512xi32>
    %42 = arith.cmpi sge, %40, %41 : vector<1x512xi32>
    %c-1_i32_15 = arith.constant -1 : i32
    %43 = vector.broadcast %c-1_i32_15 : i32 to vector<1x512xi32>
    %44 = arith.addi %9, %43 : vector<1x512xi32>
    %c16_i32_16 = arith.constant 16 : i32
    %45 = vector.broadcast %c16_i32_16 : i32 to vector<1x512xi32>
    %46 = arith.cmpi slt, %44, %45 : vector<1x512xi32>
    %47 = arith.andi %42, %46 : vector<1x512xi1>
    %c0_i32_17 = arith.constant 0 : i32
    %48 = vector.broadcast %c0_i32_17 : i32 to vector<1x512xi32>
    %49 = arith.addi %5, %48 : vector<1x512xi32>
    %c0_i32_18 = arith.constant 0 : i32
    %50 = vector.broadcast %c0_i32_18 : i32 to vector<1x512xi32>
    %51 = arith.cmpi sge, %49, %50 : vector<1x512xi32>
    %52 = arith.andi %47, %51 : vector<1x512xi1>
    %c0_i32_19 = arith.constant 0 : i32
    %53 = vector.broadcast %c0_i32_19 : i32 to vector<1x512xi32>
    %54 = arith.addi %5, %53 : vector<1x512xi32>
    %c16_i32_20 = arith.constant 16 : i32
    %55 = vector.broadcast %c16_i32_20 : i32 to vector<1x512xi32>
    %56 = arith.cmpi slt, %54, %55 : vector<1x512xi32>
    %57 = arith.andi %52, %56 : vector<1x512xi1>
    %cst_21 = arith.constant 0.000000e+00 : f32
    %58 = vector.shape_cast %57 : vector<1x512xi1> to vector<1x512xi1>
    %59 = vector.broadcast %58 : vector<1x512xi1> to vector<4x512xi1>
    %60 = vector.broadcast %cst_21 : f32 to vector<4x512xf32>
    %61 = arith.select %59, %38, %60 : vector<4x512xi1>, vector<4x512xf32>
    %cst_22 = arith.constant 0.000000e+00 : f32
    %62 = vector.broadcast %cst_22 : f32 to vector<4x15xf32>
    %63 = vector.extract_strided_slice %0 {offsets = [0, 0], sizes = [4, 497], strides = [1, 1]} : vector<4x512xf32> to vector<4x497xf32>
    %64 = tpu.concatenate %62, %63 in 1 : vector<4x15xf32>, vector<4x497xf32> -> vector<4x512xf32>
    %c-1_i32_23 = arith.constant -1 : i32
    %65 = vector.broadcast %c-1_i32_23 : i32 to vector<1x512xi32>
    %66 = arith.addi %9, %65 : vector<1x512xi32>
    %c0_i32_24 = arith.constant 0 : i32
    %67 = vector.broadcast %c0_i32_24 : i32 to vector<1x512xi32>
    %68 = arith.cmpi sge, %66, %67 : vector<1x512xi32>
    %c-1_i32_25 = arith.constant -1 : i32
    %69 = vector.broadcast %c-1_i32_25 : i32 to vector<1x512xi32>
    %70 = arith.addi %9, %69 : vector<1x512xi32>
    %c16_i32_26 = arith.constant 16 : i32
    %71 = vector.broadcast %c16_i32_26 : i32 to vector<1x512xi32>
    %72 = arith.cmpi slt, %70, %71 : vector<1x512xi32>
    %73 = arith.andi %68, %72 : vector<1x512xi1>
    %c1_i32 = arith.constant 1 : i32
    %74 = vector.broadcast %c1_i32 : i32 to vector<1x512xi32>
    %75 = arith.addi %5, %74 : vector<1x512xi32>
    %c0_i32_27 = arith.constant 0 : i32
    %76 = vector.broadcast %c0_i32_27 : i32 to vector<1x512xi32>
    %77 = arith.cmpi sge, %75, %76 : vector<1x512xi32>
    %78 = arith.andi %73, %77 : vector<1x512xi1>
    %c1_i32_28 = arith.constant 1 : i32
    %79 = vector.broadcast %c1_i32_28 : i32 to vector<1x512xi32>
    %80 = arith.addi %5, %79 : vector<1x512xi32>
    %c16_i32_29 = arith.constant 16 : i32
    %81 = vector.broadcast %c16_i32_29 : i32 to vector<1x512xi32>
    %82 = arith.cmpi slt, %80, %81 : vector<1x512xi32>
    %83 = arith.andi %78, %82 : vector<1x512xi1>
    %cst_30 = arith.constant 0.000000e+00 : f32
    %84 = vector.shape_cast %83 : vector<1x512xi1> to vector<1x512xi1>
    %85 = vector.broadcast %84 : vector<1x512xi1> to vector<4x512xi1>
    %86 = vector.broadcast %cst_30 : f32 to vector<4x512xf32>
    %87 = arith.select %85, %64, %86 : vector<4x512xi1>, vector<4x512xf32>
    %cst_31 = arith.constant 0.000000e+00 : f32
    %88 = vector.broadcast %cst_31 : f32 to vector<4x1xf32>
    %89 = vector.extract_strided_slice %0 {offsets = [0, 0], sizes = [4, 511], strides = [1, 1]} : vector<4x512xf32> to vector<4x511xf32>
    %90 = tpu.concatenate %88, %89 in 1 : vector<4x1xf32>, vector<4x511xf32> -> vector<4x512xf32>
    %c0_i32_32 = arith.constant 0 : i32
    %91 = vector.broadcast %c0_i32_32 : i32 to vector<1x512xi32>
    %92 = arith.addi %9, %91 : vector<1x512xi32>
    %c0_i32_33 = arith.constant 0 : i32
    %93 = vector.broadcast %c0_i32_33 : i32 to vector<1x512xi32>
    %94 = arith.cmpi sge, %92, %93 : vector<1x512xi32>
    %c0_i32_34 = arith.constant 0 : i32
    %95 = vector.broadcast %c0_i32_34 : i32 to vector<1x512xi32>
    %96 = arith.addi %9, %95 : vector<1x512xi32>
    %c16_i32_35 = arith.constant 16 : i32
    %97 = vector.broadcast %c16_i32_35 : i32 to vector<1x512xi32>
    %98 = arith.cmpi slt, %96, %97 : vector<1x512xi32>
    %99 = arith.andi %94, %98 : vector<1x512xi1>
    %c-1_i32_36 = arith.constant -1 : i32
    %100 = vector.broadcast %c-1_i32_36 : i32 to vector<1x512xi32>
    %101 = arith.addi %5, %100 : vector<1x512xi32>
    %c0_i32_37 = arith.constant 0 : i32
    %102 = vector.broadcast %c0_i32_37 : i32 to vector<1x512xi32>
    %103 = arith.cmpi sge, %101, %102 : vector<1x512xi32>
    %104 = arith.andi %99, %103 : vector<1x512xi1>
    %c-1_i32_38 = arith.constant -1 : i32
    %105 = vector.broadcast %c-1_i32_38 : i32 to vector<1x512xi32>
    %106 = arith.addi %5, %105 : vector<1x512xi32>
    %c16_i32_39 = arith.constant 16 : i32
    %107 = vector.broadcast %c16_i32_39 : i32 to vector<1x512xi32>
    %108 = arith.cmpi slt, %106, %107 : vector<1x512xi32>
    %109 = arith.andi %104, %108 : vector<1x512xi1>
    %cst_40 = arith.constant 0.000000e+00 : f32
    %110 = vector.shape_cast %109 : vector<1x512xi1> to vector<1x512xi1>
    %111 = vector.broadcast %110 : vector<1x512xi1> to vector<4x512xi1>
    %112 = vector.broadcast %cst_40 : f32 to vector<4x512xf32>
    %113 = arith.select %111, %90, %112 : vector<4x512xi1>, vector<4x512xf32>
    %c0_i32_41 = arith.constant 0 : i32
    %114 = vector.broadcast %c0_i32_41 : i32 to vector<1x512xi32>
    %115 = arith.addi %9, %114 : vector<1x512xi32>
    %c0_i32_42 = arith.constant 0 : i32
    %116 = vector.broadcast %c0_i32_42 : i32 to vector<1x512xi32>
    %117 = arith.cmpi sge, %115, %116 : vector<1x512xi32>
    %c0_i32_43 = arith.constant 0 : i32
    %118 = vector.broadcast %c0_i32_43 : i32 to vector<1x512xi32>
    %119 = arith.addi %9, %118 : vector<1x512xi32>
    %c16_i32_44 = arith.constant 16 : i32
    %120 = vector.broadcast %c16_i32_44 : i32 to vector<1x512xi32>
    %121 = arith.cmpi slt, %119, %120 : vector<1x512xi32>
    %122 = arith.andi %117, %121 : vector<1x512xi1>
    %c0_i32_45 = arith.constant 0 : i32
    %123 = vector.broadcast %c0_i32_45 : i32 to vector<1x512xi32>
    %124 = arith.addi %5, %123 : vector<1x512xi32>
    %c0_i32_46 = arith.constant 0 : i32
    %125 = vector.broadcast %c0_i32_46 : i32 to vector<1x512xi32>
    %126 = arith.cmpi sge, %124, %125 : vector<1x512xi32>
    %127 = arith.andi %122, %126 : vector<1x512xi1>
    %c0_i32_47 = arith.constant 0 : i32
    %128 = vector.broadcast %c0_i32_47 : i32 to vector<1x512xi32>
    %129 = arith.addi %5, %128 : vector<1x512xi32>
    %c16_i32_48 = arith.constant 16 : i32
    %130 = vector.broadcast %c16_i32_48 : i32 to vector<1x512xi32>
    %131 = arith.cmpi slt, %129, %130 : vector<1x512xi32>
    %132 = arith.andi %127, %131 : vector<1x512xi1>
    %cst_49 = arith.constant 0.000000e+00 : f32
    %133 = vector.shape_cast %132 : vector<1x512xi1> to vector<1x512xi1>
    %134 = vector.broadcast %133 : vector<1x512xi1> to vector<4x512xi1>
    %135 = vector.broadcast %cst_49 : f32 to vector<4x512xf32>
    %136 = arith.select %134, %0, %135 : vector<4x512xi1>, vector<4x512xf32>
    %137 = vector.extract_strided_slice %0 {offsets = [0, 1], sizes = [4, 511], strides = [1, 1]} : vector<4x512xf32> to vector<4x511xf32>
    %cst_50 = arith.constant 0.000000e+00 : f32
    %138 = vector.broadcast %cst_50 : f32 to vector<4x1xf32>
    %139 = tpu.concatenate %137, %138 in 1 : vector<4x511xf32>, vector<4x1xf32> -> vector<4x512xf32>
    %c0_i32_51 = arith.constant 0 : i32
    %140 = vector.broadcast %c0_i32_51 : i32 to vector<1x512xi32>
    %141 = arith.addi %9, %140 : vector<1x512xi32>
    %c0_i32_52 = arith.constant 0 : i32
    %142 = vector.broadcast %c0_i32_52 : i32 to vector<1x512xi32>
    %143 = arith.cmpi sge, %141, %142 : vector<1x512xi32>
    %c0_i32_53 = arith.constant 0 : i32
    %144 = vector.broadcast %c0_i32_53 : i32 to vector<1x512xi32>
    %145 = arith.addi %9, %144 : vector<1x512xi32>
    %c16_i32_54 = arith.constant 16 : i32
    %146 = vector.broadcast %c16_i32_54 : i32 to vector<1x512xi32>
    %147 = arith.cmpi slt, %145, %146 : vector<1x512xi32>
    %148 = arith.andi %143, %147 : vector<1x512xi1>
    %c1_i32_55 = arith.constant 1 : i32
    %149 = vector.broadcast %c1_i32_55 : i32 to vector<1x512xi32>
    %150 = arith.addi %5, %149 : vector<1x512xi32>
    %c0_i32_56 = arith.constant 0 : i32
    %151 = vector.broadcast %c0_i32_56 : i32 to vector<1x512xi32>
    %152 = arith.cmpi sge, %150, %151 : vector<1x512xi32>
    %153 = arith.andi %148, %152 : vector<1x512xi1>
    %c1_i32_57 = arith.constant 1 : i32
    %154 = vector.broadcast %c1_i32_57 : i32 to vector<1x512xi32>
    %155 = arith.addi %5, %154 : vector<1x512xi32>
    %c16_i32_58 = arith.constant 16 : i32
    %156 = vector.broadcast %c16_i32_58 : i32 to vector<1x512xi32>
    %157 = arith.cmpi slt, %155, %156 : vector<1x512xi32>
    %158 = arith.andi %153, %157 : vector<1x512xi1>
    %cst_59 = arith.constant 0.000000e+00 : f32
    %159 = vector.shape_cast %158 : vector<1x512xi1> to vector<1x512xi1>
    %160 = vector.broadcast %159 : vector<1x512xi1> to vector<4x512xi1>
    %161 = vector.broadcast %cst_59 : f32 to vector<4x512xf32>
    %162 = arith.select %160, %139, %161 : vector<4x512xi1>, vector<4x512xf32>
    %163 = vector.extract_strided_slice %0 {offsets = [0, 15], sizes = [4, 497], strides = [1, 1]} : vector<4x512xf32> to vector<4x497xf32>
    %cst_60 = arith.constant 0.000000e+00 : f32
    %164 = vector.broadcast %cst_60 : f32 to vector<4x15xf32>
    %165 = tpu.concatenate %163, %164 in 1 : vector<4x497xf32>, vector<4x15xf32> -> vector<4x512xf32>
    %c1_i32_61 = arith.constant 1 : i32
    %166 = vector.broadcast %c1_i32_61 : i32 to vector<1x512xi32>
    %167 = arith.addi %9, %166 : vector<1x512xi32>
    %c0_i32_62 = arith.constant 0 : i32
    %168 = vector.broadcast %c0_i32_62 : i32 to vector<1x512xi32>
    %169 = arith.cmpi sge, %167, %168 : vector<1x512xi32>
    %c1_i32_63 = arith.constant 1 : i32
    %170 = vector.broadcast %c1_i32_63 : i32 to vector<1x512xi32>
    %171 = arith.addi %9, %170 : vector<1x512xi32>
    %c16_i32_64 = arith.constant 16 : i32
    %172 = vector.broadcast %c16_i32_64 : i32 to vector<1x512xi32>
    %173 = arith.cmpi slt, %171, %172 : vector<1x512xi32>
    %174 = arith.andi %169, %173 : vector<1x512xi1>
    %c-1_i32_65 = arith.constant -1 : i32
    %175 = vector.broadcast %c-1_i32_65 : i32 to vector<1x512xi32>
    %176 = arith.addi %5, %175 : vector<1x512xi32>
    %c0_i32_66 = arith.constant 0 : i32
    %177 = vector.broadcast %c0_i32_66 : i32 to vector<1x512xi32>
    %178 = arith.cmpi sge, %176, %177 : vector<1x512xi32>
    %179 = arith.andi %174, %178 : vector<1x512xi1>
    %c-1_i32_67 = arith.constant -1 : i32
    %180 = vector.broadcast %c-1_i32_67 : i32 to vector<1x512xi32>
    %181 = arith.addi %5, %180 : vector<1x512xi32>
    %c16_i32_68 = arith.constant 16 : i32
    %182 = vector.broadcast %c16_i32_68 : i32 to vector<1x512xi32>
    %183 = arith.cmpi slt, %181, %182 : vector<1x512xi32>
    %184 = arith.andi %179, %183 : vector<1x512xi1>
    %cst_69 = arith.constant 0.000000e+00 : f32
    %185 = vector.shape_cast %184 : vector<1x512xi1> to vector<1x512xi1>
    %186 = vector.broadcast %185 : vector<1x512xi1> to vector<4x512xi1>
    %187 = vector.broadcast %cst_69 : f32 to vector<4x512xf32>
    %188 = arith.select %186, %165, %187 : vector<4x512xi1>, vector<4x512xf32>
    %189 = vector.extract_strided_slice %0 {offsets = [0, 16], sizes = [4, 496], strides = [1, 1]} : vector<4x512xf32> to vector<4x496xf32>
    %cst_70 = arith.constant 0.000000e+00 : f32
    %190 = vector.broadcast %cst_70 : f32 to vector<4x16xf32>
    %191 = tpu.concatenate %189, %190 in 1 : vector<4x496xf32>, vector<4x16xf32> -> vector<4x512xf32>
    %c1_i32_71 = arith.constant 1 : i32
    %192 = vector.broadcast %c1_i32_71 : i32 to vector<1x512xi32>
    %193 = arith.addi %9, %192 : vector<1x512xi32>
    %c0_i32_72 = arith.constant 0 : i32
    %194 = vector.broadcast %c0_i32_72 : i32 to vector<1x512xi32>
    %195 = arith.cmpi sge, %193, %194 : vector<1x512xi32>
    %c1_i32_73 = arith.constant 1 : i32
    %196 = vector.broadcast %c1_i32_73 : i32 to vector<1x512xi32>
    %197 = arith.addi %9, %196 : vector<1x512xi32>
    %c16_i32_74 = arith.constant 16 : i32
    %198 = vector.broadcast %c16_i32_74 : i32 to vector<1x512xi32>
    %199 = arith.cmpi slt, %197, %198 : vector<1x512xi32>
    %200 = arith.andi %195, %199 : vector<1x512xi1>
    %c0_i32_75 = arith.constant 0 : i32
    %201 = vector.broadcast %c0_i32_75 : i32 to vector<1x512xi32>
    %202 = arith.addi %5, %201 : vector<1x512xi32>
    %c0_i32_76 = arith.constant 0 : i32
    %203 = vector.broadcast %c0_i32_76 : i32 to vector<1x512xi32>
    %204 = arith.cmpi sge, %202, %203 : vector<1x512xi32>
    %205 = arith.andi %200, %204 : vector<1x512xi1>
    %c0_i32_77 = arith.constant 0 : i32
    %206 = vector.broadcast %c0_i32_77 : i32 to vector<1x512xi32>
    %207 = arith.addi %5, %206 : vector<1x512xi32>
    %c16_i32_78 = arith.constant 16 : i32
    %208 = vector.broadcast %c16_i32_78 : i32 to vector<1x512xi32>
    %209 = arith.cmpi slt, %207, %208 : vector<1x512xi32>
    %210 = arith.andi %205, %209 : vector<1x512xi1>
    %cst_79 = arith.constant 0.000000e+00 : f32
    %211 = vector.shape_cast %210 : vector<1x512xi1> to vector<1x512xi1>
    %212 = vector.broadcast %211 : vector<1x512xi1> to vector<4x512xi1>
    %213 = vector.broadcast %cst_79 : f32 to vector<4x512xf32>
    %214 = arith.select %212, %191, %213 : vector<4x512xi1>, vector<4x512xf32>
    %215 = vector.extract_strided_slice %0 {offsets = [0, 17], sizes = [4, 495], strides = [1, 1]} : vector<4x512xf32> to vector<4x495xf32>
    %cst_80 = arith.constant 0.000000e+00 : f32
    %216 = vector.broadcast %cst_80 : f32 to vector<4x17xf32>
    %217 = tpu.concatenate %215, %216 in 1 : vector<4x495xf32>, vector<4x17xf32> -> vector<4x512xf32>
    %c1_i32_81 = arith.constant 1 : i32
    %218 = vector.broadcast %c1_i32_81 : i32 to vector<1x512xi32>
    %219 = arith.addi %9, %218 : vector<1x512xi32>
    %c0_i32_82 = arith.constant 0 : i32
    %220 = vector.broadcast %c0_i32_82 : i32 to vector<1x512xi32>
    %221 = arith.cmpi sge, %219, %220 : vector<1x512xi32>
    %c1_i32_83 = arith.constant 1 : i32
    %222 = vector.broadcast %c1_i32_83 : i32 to vector<1x512xi32>
    %223 = arith.addi %9, %222 : vector<1x512xi32>
    %c16_i32_84 = arith.constant 16 : i32
    %224 = vector.broadcast %c16_i32_84 : i32 to vector<1x512xi32>
    %225 = arith.cmpi slt, %223, %224 : vector<1x512xi32>
    %226 = arith.andi %221, %225 : vector<1x512xi1>
    %c1_i32_85 = arith.constant 1 : i32
    %227 = vector.broadcast %c1_i32_85 : i32 to vector<1x512xi32>
    %228 = arith.addi %5, %227 : vector<1x512xi32>
    %c0_i32_86 = arith.constant 0 : i32
    %229 = vector.broadcast %c0_i32_86 : i32 to vector<1x512xi32>
    %230 = arith.cmpi sge, %228, %229 : vector<1x512xi32>
    %231 = arith.andi %226, %230 : vector<1x512xi1>
    %c1_i32_87 = arith.constant 1 : i32
    %232 = vector.broadcast %c1_i32_87 : i32 to vector<1x512xi32>
    %233 = arith.addi %5, %232 : vector<1x512xi32>
    %c16_i32_88 = arith.constant 16 : i32
    %234 = vector.broadcast %c16_i32_88 : i32 to vector<1x512xi32>
    %235 = arith.cmpi slt, %233, %234 : vector<1x512xi32>
    %236 = arith.andi %231, %235 : vector<1x512xi1>
    %cst_89 = arith.constant 0.000000e+00 : f32
    %237 = vector.shape_cast %236 : vector<1x512xi1> to vector<1x512xi1>
    %238 = vector.broadcast %237 : vector<1x512xi1> to vector<4x512xi1>
    %239 = vector.broadcast %cst_89 : f32 to vector<4x512xf32>
    %240 = arith.select %238, %217, %239 : vector<4x512xi1>, vector<4x512xf32>
    %241 = tpu.concatenate %35, %61, %87, %113, %136, %162, %188, %214, %240 in 0 : vector<4x512xf32>, vector<4x512xf32>, vector<4x512xf32>, vector<4x512xf32>, vector<4x512xf32>, vector<4x512xf32>, vector<4x512xf32>, vector<4x512xf32>, vector<4x512xf32> -> vector<36x512xf32>
    %242 = arith.truncf %241 : vector<36x512xf32> to vector<36x512xbf16>
    %cst_90 = arith.constant dense<0.000000e+00> : vector<8x512xf32>
    %243 = tpu.matmul %2, %242, %cst_90 {dimension_numbers = #tpu.dot_dimension_numbers<[1], [0], [0], [1], [0, 0, 1, 1], [], []>} : vector<8x36xbf16>, vector<36x512xbf16>, vector<8x512xf32> -> vector<8x512xf32>
    %c0_91 = arith.constant 0 : index
    %c0_92 = arith.constant 0 : index
    %244 = vector.load %arg4[%c0_91, %c0_92] : memref<4x8xf32, #tpu.memory_space<vmem>>, vector<4x8xf32>
    %c0_93 = arith.constant 0 : index
    %c0_94 = arith.constant 0 : index
    %245 = vector.load %arg3[%c0_93, %c0_94] : memref<8x2xf32, #tpu.memory_space<vmem>>, vector<8x2xf32>
    %cst_95 = arith.constant dense<0.000000e+00> : vector<4x2xf32>
    %246 = tpu.matmul %244, %245, %cst_95 {dimension_numbers = #tpu.dot_dimension_numbers<[1], [0], [0], [1], [0, 0, 1, 1], [], []>} : vector<4x8xf32>, vector<8x2xf32>, vector<4x2xf32> -> vector<4x2xf32>
    %247 = vector.extract_strided_slice %243 {offsets = [0, 0], sizes = [4, 512], strides = [1, 1]} : vector<8x512xf32> to vector<4x512xf32>
    %248 = vector.extract_strided_slice %246 {offsets = [0, 0], sizes = [4, 1], strides = [1, 1]} : vector<4x2xf32> to vector<4x1xf32>
    %249 = vector.shape_cast %248 : vector<4x1xf32> to vector<4x1xf32>
    %250 = vector.broadcast %249 : vector<4x1xf32> to vector<4x256xf32>
    %251 = vector.extract_strided_slice %246 {offsets = [0, 1], sizes = [4, 1], strides = [1, 1]} : vector<4x2xf32> to vector<4x1xf32>
    %252 = vector.shape_cast %251 : vector<4x1xf32> to vector<4x1xf32>
    %253 = vector.broadcast %252 : vector<4x1xf32> to vector<4x256xf32>
    %254 = tpu.concatenate %250, %253 in 1 : vector<4x256xf32>, vector<4x256xf32> -> vector<4x512xf32>
    %255 = arith.addf %247, %254 : vector<4x512xf32>
    %256 = math.tanh %255 : vector<4x512xf32>
    %257 = arith.mulf %256, %1 : vector<4x512xf32>
    %cst_96 = arith.constant 1.000000e+00 : f32
    %258 = vector.broadcast %cst_96 : f32 to vector<4x512xf32>
    %259 = arith.subf %258, %1 : vector<4x512xf32>
    %260 = arith.mulf %0, %259 : vector<4x512xf32>
    %261 = arith.addf %257, %260 : vector<4x512xf32>
    %c0_97 = arith.constant 0 : index
    %c0_98 = arith.constant 0 : index
    %262 = vector.load %arg2[%c0_97, %c0_98] : memref<4x512xf32, #tpu.memory_space<vmem>>, vector<4x512xf32>
    %263 = arith.mulf %261, %262 : vector<4x512xf32>
    %264 = vector.extract_strided_slice %2 {offsets = [4, 0], sizes = [4, 36], strides = [1, 1]} : vector<8x36xbf16> to vector<4x36xbf16>
    %265 = tpu.iota {dimensions = array<i32: 1>} : vector<1x512xi32>
    %c15_i32_99 = arith.constant 15 : i32
    %266 = vector.broadcast %c15_i32_99 : i32 to vector<1x512xi32>
    %267 = arith.andi %265, %266 : vector<1x512xi32>
    %c4_i32_100 = arith.constant 4 : i32
    %268 = vector.broadcast %c4_i32_100 : i32 to vector<1x512xi32>
    %269 = arith.shrsi %265, %268 : vector<1x512xi32>
    %c15_i32_101 = arith.constant 15 : i32
    %270 = vector.broadcast %c15_i32_101 : i32 to vector<1x512xi32>
    %271 = arith.andi %269, %270 : vector<1x512xi32>
    %cst_102 = arith.constant 0.000000e+00 : f32
    %272 = vector.broadcast %cst_102 : f32 to vector<4x17xf32>
    %273 = vector.extract_strided_slice %263 {offsets = [0, 0], sizes = [4, 495], strides = [1, 1]} : vector<4x512xf32> to vector<4x495xf32>
    %274 = tpu.concatenate %272, %273 in 1 : vector<4x17xf32>, vector<4x495xf32> -> vector<4x512xf32>
    %c-1_i32_103 = arith.constant -1 : i32
    %275 = vector.broadcast %c-1_i32_103 : i32 to vector<1x512xi32>
    %276 = arith.addi %271, %275 : vector<1x512xi32>
    %c0_i32_104 = arith.constant 0 : i32
    %277 = vector.broadcast %c0_i32_104 : i32 to vector<1x512xi32>
    %278 = arith.cmpi sge, %276, %277 : vector<1x512xi32>
    %c-1_i32_105 = arith.constant -1 : i32
    %279 = vector.broadcast %c-1_i32_105 : i32 to vector<1x512xi32>
    %280 = arith.addi %271, %279 : vector<1x512xi32>
    %c16_i32_106 = arith.constant 16 : i32
    %281 = vector.broadcast %c16_i32_106 : i32 to vector<1x512xi32>
    %282 = arith.cmpi slt, %280, %281 : vector<1x512xi32>
    %283 = arith.andi %278, %282 : vector<1x512xi1>
    %c-1_i32_107 = arith.constant -1 : i32
    %284 = vector.broadcast %c-1_i32_107 : i32 to vector<1x512xi32>
    %285 = arith.addi %267, %284 : vector<1x512xi32>
    %c0_i32_108 = arith.constant 0 : i32
    %286 = vector.broadcast %c0_i32_108 : i32 to vector<1x512xi32>
    %287 = arith.cmpi sge, %285, %286 : vector<1x512xi32>
    %288 = arith.andi %283, %287 : vector<1x512xi1>
    %c-1_i32_109 = arith.constant -1 : i32
    %289 = vector.broadcast %c-1_i32_109 : i32 to vector<1x512xi32>
    %290 = arith.addi %267, %289 : vector<1x512xi32>
    %c16_i32_110 = arith.constant 16 : i32
    %291 = vector.broadcast %c16_i32_110 : i32 to vector<1x512xi32>
    %292 = arith.cmpi slt, %290, %291 : vector<1x512xi32>
    %293 = arith.andi %288, %292 : vector<1x512xi1>
    %cst_111 = arith.constant 0.000000e+00 : f32
    %294 = vector.shape_cast %293 : vector<1x512xi1> to vector<1x512xi1>
    %295 = vector.broadcast %294 : vector<1x512xi1> to vector<4x512xi1>
    %296 = vector.broadcast %cst_111 : f32 to vector<4x512xf32>
    %297 = arith.select %295, %274, %296 : vector<4x512xi1>, vector<4x512xf32>
    %cst_112 = arith.constant 0.000000e+00 : f32
    %298 = vector.broadcast %cst_112 : f32 to vector<4x16xf32>
    %299 = vector.extract_strided_slice %263 {offsets = [0, 0], sizes = [4, 496], strides = [1, 1]} : vector<4x512xf32> to vector<4x496xf32>
    %300 = tpu.concatenate %298, %299 in 1 : vector<4x16xf32>, vector<4x496xf32> -> vector<4x512xf32>
    %c-1_i32_113 = arith.constant -1 : i32
    %301 = vector.broadcast %c-1_i32_113 : i32 to vector<1x512xi32>
    %302 = arith.addi %271, %301 : vector<1x512xi32>
    %c0_i32_114 = arith.constant 0 : i32
    %303 = vector.broadcast %c0_i32_114 : i32 to vector<1x512xi32>
    %304 = arith.cmpi sge, %302, %303 : vector<1x512xi32>
    %c-1_i32_115 = arith.constant -1 : i32
    %305 = vector.broadcast %c-1_i32_115 : i32 to vector<1x512xi32>
    %306 = arith.addi %271, %305 : vector<1x512xi32>
    %c16_i32_116 = arith.constant 16 : i32
    %307 = vector.broadcast %c16_i32_116 : i32 to vector<1x512xi32>
    %308 = arith.cmpi slt, %306, %307 : vector<1x512xi32>
    %309 = arith.andi %304, %308 : vector<1x512xi1>
    %c0_i32_117 = arith.constant 0 : i32
    %310 = vector.broadcast %c0_i32_117 : i32 to vector<1x512xi32>
    %311 = arith.addi %267, %310 : vector<1x512xi32>
    %c0_i32_118 = arith.constant 0 : i32
    %312 = vector.broadcast %c0_i32_118 : i32 to vector<1x512xi32>
    %313 = arith.cmpi sge, %311, %312 : vector<1x512xi32>
    %314 = arith.andi %309, %313 : vector<1x512xi1>
    %c0_i32_119 = arith.constant 0 : i32
    %315 = vector.broadcast %c0_i32_119 : i32 to vector<1x512xi32>
    %316 = arith.addi %267, %315 : vector<1x512xi32>
    %c16_i32_120 = arith.constant 16 : i32
    %317 = vector.broadcast %c16_i32_120 : i32 to vector<1x512xi32>
    %318 = arith.cmpi slt, %316, %317 : vector<1x512xi32>
    %319 = arith.andi %314, %318 : vector<1x512xi1>
    %cst_121 = arith.constant 0.000000e+00 : f32
    %320 = vector.shape_cast %319 : vector<1x512xi1> to vector<1x512xi1>
    %321 = vector.broadcast %320 : vector<1x512xi1> to vector<4x512xi1>
    %322 = vector.broadcast %cst_121 : f32 to vector<4x512xf32>
    %323 = arith.select %321, %300, %322 : vector<4x512xi1>, vector<4x512xf32>
    %cst_122 = arith.constant 0.000000e+00 : f32
    %324 = vector.broadcast %cst_122 : f32 to vector<4x15xf32>
    %325 = vector.extract_strided_slice %263 {offsets = [0, 0], sizes = [4, 497], strides = [1, 1]} : vector<4x512xf32> to vector<4x497xf32>
    %326 = tpu.concatenate %324, %325 in 1 : vector<4x15xf32>, vector<4x497xf32> -> vector<4x512xf32>
    %c-1_i32_123 = arith.constant -1 : i32
    %327 = vector.broadcast %c-1_i32_123 : i32 to vector<1x512xi32>
    %328 = arith.addi %271, %327 : vector<1x512xi32>
    %c0_i32_124 = arith.constant 0 : i32
    %329 = vector.broadcast %c0_i32_124 : i32 to vector<1x512xi32>
    %330 = arith.cmpi sge, %328, %329 : vector<1x512xi32>
    %c-1_i32_125 = arith.constant -1 : i32
    %331 = vector.broadcast %c-1_i32_125 : i32 to vector<1x512xi32>
    %332 = arith.addi %271, %331 : vector<1x512xi32>
    %c16_i32_126 = arith.constant 16 : i32
    %333 = vector.broadcast %c16_i32_126 : i32 to vector<1x512xi32>
    %334 = arith.cmpi slt, %332, %333 : vector<1x512xi32>
    %335 = arith.andi %330, %334 : vector<1x512xi1>
    %c1_i32_127 = arith.constant 1 : i32
    %336 = vector.broadcast %c1_i32_127 : i32 to vector<1x512xi32>
    %337 = arith.addi %267, %336 : vector<1x512xi32>
    %c0_i32_128 = arith.constant 0 : i32
    %338 = vector.broadcast %c0_i32_128 : i32 to vector<1x512xi32>
    %339 = arith.cmpi sge, %337, %338 : vector<1x512xi32>
    %340 = arith.andi %335, %339 : vector<1x512xi1>
    %c1_i32_129 = arith.constant 1 : i32
    %341 = vector.broadcast %c1_i32_129 : i32 to vector<1x512xi32>
    %342 = arith.addi %267, %341 : vector<1x512xi32>
    %c16_i32_130 = arith.constant 16 : i32
    %343 = vector.broadcast %c16_i32_130 : i32 to vector<1x512xi32>
    %344 = arith.cmpi slt, %342, %343 : vector<1x512xi32>
    %345 = arith.andi %340, %344 : vector<1x512xi1>
    %cst_131 = arith.constant 0.000000e+00 : f32
    %346 = vector.shape_cast %345 : vector<1x512xi1> to vector<1x512xi1>
    %347 = vector.broadcast %346 : vector<1x512xi1> to vector<4x512xi1>
    %348 = vector.broadcast %cst_131 : f32 to vector<4x512xf32>
    %349 = arith.select %347, %326, %348 : vector<4x512xi1>, vector<4x512xf32>
    %cst_132 = arith.constant 0.000000e+00 : f32
    %350 = vector.broadcast %cst_132 : f32 to vector<4x1xf32>
    %351 = vector.extract_strided_slice %263 {offsets = [0, 0], sizes = [4, 511], strides = [1, 1]} : vector<4x512xf32> to vector<4x511xf32>
    %352 = tpu.concatenate %350, %351 in 1 : vector<4x1xf32>, vector<4x511xf32> -> vector<4x512xf32>
    %c0_i32_133 = arith.constant 0 : i32
    %353 = vector.broadcast %c0_i32_133 : i32 to vector<1x512xi32>
    %354 = arith.addi %271, %353 : vector<1x512xi32>
    %c0_i32_134 = arith.constant 0 : i32
    %355 = vector.broadcast %c0_i32_134 : i32 to vector<1x512xi32>
    %356 = arith.cmpi sge, %354, %355 : vector<1x512xi32>
    %c0_i32_135 = arith.constant 0 : i32
    %357 = vector.broadcast %c0_i32_135 : i32 to vector<1x512xi32>
    %358 = arith.addi %271, %357 : vector<1x512xi32>
    %c16_i32_136 = arith.constant 16 : i32
    %359 = vector.broadcast %c16_i32_136 : i32 to vector<1x512xi32>
    %360 = arith.cmpi slt, %358, %359 : vector<1x512xi32>
    %361 = arith.andi %356, %360 : vector<1x512xi1>
    %c-1_i32_137 = arith.constant -1 : i32
    %362 = vector.broadcast %c-1_i32_137 : i32 to vector<1x512xi32>
    %363 = arith.addi %267, %362 : vector<1x512xi32>
    %c0_i32_138 = arith.constant 0 : i32
    %364 = vector.broadcast %c0_i32_138 : i32 to vector<1x512xi32>
    %365 = arith.cmpi sge, %363, %364 : vector<1x512xi32>
    %366 = arith.andi %361, %365 : vector<1x512xi1>
    %c-1_i32_139 = arith.constant -1 : i32
    %367 = vector.broadcast %c-1_i32_139 : i32 to vector<1x512xi32>
    %368 = arith.addi %267, %367 : vector<1x512xi32>
    %c16_i32_140 = arith.constant 16 : i32
    %369 = vector.broadcast %c16_i32_140 : i32 to vector<1x512xi32>
    %370 = arith.cmpi slt, %368, %369 : vector<1x512xi32>
    %371 = arith.andi %366, %370 : vector<1x512xi1>
    %cst_141 = arith.constant 0.000000e+00 : f32
    %372 = vector.shape_cast %371 : vector<1x512xi1> to vector<1x512xi1>
    %373 = vector.broadcast %372 : vector<1x512xi1> to vector<4x512xi1>
    %374 = vector.broadcast %cst_141 : f32 to vector<4x512xf32>
    %375 = arith.select %373, %352, %374 : vector<4x512xi1>, vector<4x512xf32>
    %c0_i32_142 = arith.constant 0 : i32
    %376 = vector.broadcast %c0_i32_142 : i32 to vector<1x512xi32>
    %377 = arith.addi %271, %376 : vector<1x512xi32>
    %c0_i32_143 = arith.constant 0 : i32
    %378 = vector.broadcast %c0_i32_143 : i32 to vector<1x512xi32>
    %379 = arith.cmpi sge, %377, %378 : vector<1x512xi32>
    %c0_i32_144 = arith.constant 0 : i32
    %380 = vector.broadcast %c0_i32_144 : i32 to vector<1x512xi32>
    %381 = arith.addi %271, %380 : vector<1x512xi32>
    %c16_i32_145 = arith.constant 16 : i32
    %382 = vector.broadcast %c16_i32_145 : i32 to vector<1x512xi32>
    %383 = arith.cmpi slt, %381, %382 : vector<1x512xi32>
    %384 = arith.andi %379, %383 : vector<1x512xi1>
    %c0_i32_146 = arith.constant 0 : i32
    %385 = vector.broadcast %c0_i32_146 : i32 to vector<1x512xi32>
    %386 = arith.addi %267, %385 : vector<1x512xi32>
    %c0_i32_147 = arith.constant 0 : i32
    %387 = vector.broadcast %c0_i32_147 : i32 to vector<1x512xi32>
    %388 = arith.cmpi sge, %386, %387 : vector<1x512xi32>
    %389 = arith.andi %384, %388 : vector<1x512xi1>
    %c0_i32_148 = arith.constant 0 : i32
    %390 = vector.broadcast %c0_i32_148 : i32 to vector<1x512xi32>
    %391 = arith.addi %267, %390 : vector<1x512xi32>
    %c16_i32_149 = arith.constant 16 : i32
    %392 = vector.broadcast %c16_i32_149 : i32 to vector<1x512xi32>
    %393 = arith.cmpi slt, %391, %392 : vector<1x512xi32>
    %394 = arith.andi %389, %393 : vector<1x512xi1>
    %cst_150 = arith.constant 0.000000e+00 : f32
    %395 = vector.shape_cast %394 : vector<1x512xi1> to vector<1x512xi1>
    %396 = vector.broadcast %395 : vector<1x512xi1> to vector<4x512xi1>
    %397 = vector.broadcast %cst_150 : f32 to vector<4x512xf32>
    %398 = arith.select %396, %263, %397 : vector<4x512xi1>, vector<4x512xf32>
    %399 = vector.extract_strided_slice %263 {offsets = [0, 1], sizes = [4, 511], strides = [1, 1]} : vector<4x512xf32> to vector<4x511xf32>
    %cst_151 = arith.constant 0.000000e+00 : f32
    %400 = vector.broadcast %cst_151 : f32 to vector<4x1xf32>
    %401 = tpu.concatenate %399, %400 in 1 : vector<4x511xf32>, vector<4x1xf32> -> vector<4x512xf32>
    %c0_i32_152 = arith.constant 0 : i32
    %402 = vector.broadcast %c0_i32_152 : i32 to vector<1x512xi32>
    %403 = arith.addi %271, %402 : vector<1x512xi32>
    %c0_i32_153 = arith.constant 0 : i32
    %404 = vector.broadcast %c0_i32_153 : i32 to vector<1x512xi32>
    %405 = arith.cmpi sge, %403, %404 : vector<1x512xi32>
    %c0_i32_154 = arith.constant 0 : i32
    %406 = vector.broadcast %c0_i32_154 : i32 to vector<1x512xi32>
    %407 = arith.addi %271, %406 : vector<1x512xi32>
    %c16_i32_155 = arith.constant 16 : i32
    %408 = vector.broadcast %c16_i32_155 : i32 to vector<1x512xi32>
    %409 = arith.cmpi slt, %407, %408 : vector<1x512xi32>
    %410 = arith.andi %405, %409 : vector<1x512xi1>
    %c1_i32_156 = arith.constant 1 : i32
    %411 = vector.broadcast %c1_i32_156 : i32 to vector<1x512xi32>
    %412 = arith.addi %267, %411 : vector<1x512xi32>
    %c0_i32_157 = arith.constant 0 : i32
    %413 = vector.broadcast %c0_i32_157 : i32 to vector<1x512xi32>
    %414 = arith.cmpi sge, %412, %413 : vector<1x512xi32>
    %415 = arith.andi %410, %414 : vector<1x512xi1>
    %c1_i32_158 = arith.constant 1 : i32
    %416 = vector.broadcast %c1_i32_158 : i32 to vector<1x512xi32>
    %417 = arith.addi %267, %416 : vector<1x512xi32>
    %c16_i32_159 = arith.constant 16 : i32
    %418 = vector.broadcast %c16_i32_159 : i32 to vector<1x512xi32>
    %419 = arith.cmpi slt, %417, %418 : vector<1x512xi32>
    %420 = arith.andi %415, %419 : vector<1x512xi1>
    %cst_160 = arith.constant 0.000000e+00 : f32
    %421 = vector.shape_cast %420 : vector<1x512xi1> to vector<1x512xi1>
    %422 = vector.broadcast %421 : vector<1x512xi1> to vector<4x512xi1>
    %423 = vector.broadcast %cst_160 : f32 to vector<4x512xf32>
    %424 = arith.select %422, %401, %423 : vector<4x512xi1>, vector<4x512xf32>
    %425 = vector.extract_strided_slice %263 {offsets = [0, 15], sizes = [4, 497], strides = [1, 1]} : vector<4x512xf32> to vector<4x497xf32>
    %cst_161 = arith.constant 0.000000e+00 : f32
    %426 = vector.broadcast %cst_161 : f32 to vector<4x15xf32>
    %427 = tpu.concatenate %425, %426 in 1 : vector<4x497xf32>, vector<4x15xf32> -> vector<4x512xf32>
    %c1_i32_162 = arith.constant 1 : i32
    %428 = vector.broadcast %c1_i32_162 : i32 to vector<1x512xi32>
    %429 = arith.addi %271, %428 : vector<1x512xi32>
    %c0_i32_163 = arith.constant 0 : i32
    %430 = vector.broadcast %c0_i32_163 : i32 to vector<1x512xi32>
    %431 = arith.cmpi sge, %429, %430 : vector<1x512xi32>
    %c1_i32_164 = arith.constant 1 : i32
    %432 = vector.broadcast %c1_i32_164 : i32 to vector<1x512xi32>
    %433 = arith.addi %271, %432 : vector<1x512xi32>
    %c16_i32_165 = arith.constant 16 : i32
    %434 = vector.broadcast %c16_i32_165 : i32 to vector<1x512xi32>
    %435 = arith.cmpi slt, %433, %434 : vector<1x512xi32>
    %436 = arith.andi %431, %435 : vector<1x512xi1>
    %c-1_i32_166 = arith.constant -1 : i32
    %437 = vector.broadcast %c-1_i32_166 : i32 to vector<1x512xi32>
    %438 = arith.addi %267, %437 : vector<1x512xi32>
    %c0_i32_167 = arith.constant 0 : i32
    %439 = vector.broadcast %c0_i32_167 : i32 to vector<1x512xi32>
    %440 = arith.cmpi sge, %438, %439 : vector<1x512xi32>
    %441 = arith.andi %436, %440 : vector<1x512xi1>
    %c-1_i32_168 = arith.constant -1 : i32
    %442 = vector.broadcast %c-1_i32_168 : i32 to vector<1x512xi32>
    %443 = arith.addi %267, %442 : vector<1x512xi32>
    %c16_i32_169 = arith.constant 16 : i32
    %444 = vector.broadcast %c16_i32_169 : i32 to vector<1x512xi32>
    %445 = arith.cmpi slt, %443, %444 : vector<1x512xi32>
    %446 = arith.andi %441, %445 : vector<1x512xi1>
    %cst_170 = arith.constant 0.000000e+00 : f32
    %447 = vector.shape_cast %446 : vector<1x512xi1> to vector<1x512xi1>
    %448 = vector.broadcast %447 : vector<1x512xi1> to vector<4x512xi1>
    %449 = vector.broadcast %cst_170 : f32 to vector<4x512xf32>
    %450 = arith.select %448, %427, %449 : vector<4x512xi1>, vector<4x512xf32>
    %451 = vector.extract_strided_slice %263 {offsets = [0, 16], sizes = [4, 496], strides = [1, 1]} : vector<4x512xf32> to vector<4x496xf32>
    %cst_171 = arith.constant 0.000000e+00 : f32
    %452 = vector.broadcast %cst_171 : f32 to vector<4x16xf32>
    %453 = tpu.concatenate %451, %452 in 1 : vector<4x496xf32>, vector<4x16xf32> -> vector<4x512xf32>
    %c1_i32_172 = arith.constant 1 : i32
    %454 = vector.broadcast %c1_i32_172 : i32 to vector<1x512xi32>
    %455 = arith.addi %271, %454 : vector<1x512xi32>
    %c0_i32_173 = arith.constant 0 : i32
    %456 = vector.broadcast %c0_i32_173 : i32 to vector<1x512xi32>
    %457 = arith.cmpi sge, %455, %456 : vector<1x512xi32>
    %c1_i32_174 = arith.constant 1 : i32
    %458 = vector.broadcast %c1_i32_174 : i32 to vector<1x512xi32>
    %459 = arith.addi %271, %458 : vector<1x512xi32>
    %c16_i32_175 = arith.constant 16 : i32
    %460 = vector.broadcast %c16_i32_175 : i32 to vector<1x512xi32>
    %461 = arith.cmpi slt, %459, %460 : vector<1x512xi32>
    %462 = arith.andi %457, %461 : vector<1x512xi1>
    %c0_i32_176 = arith.constant 0 : i32
    %463 = vector.broadcast %c0_i32_176 : i32 to vector<1x512xi32>
    %464 = arith.addi %267, %463 : vector<1x512xi32>
    %c0_i32_177 = arith.constant 0 : i32
    %465 = vector.broadcast %c0_i32_177 : i32 to vector<1x512xi32>
    %466 = arith.cmpi sge, %464, %465 : vector<1x512xi32>
    %467 = arith.andi %462, %466 : vector<1x512xi1>
    %c0_i32_178 = arith.constant 0 : i32
    %468 = vector.broadcast %c0_i32_178 : i32 to vector<1x512xi32>
    %469 = arith.addi %267, %468 : vector<1x512xi32>
    %c16_i32_179 = arith.constant 16 : i32
    %470 = vector.broadcast %c16_i32_179 : i32 to vector<1x512xi32>
    %471 = arith.cmpi slt, %469, %470 : vector<1x512xi32>
    %472 = arith.andi %467, %471 : vector<1x512xi1>
    %cst_180 = arith.constant 0.000000e+00 : f32
    %473 = vector.shape_cast %472 : vector<1x512xi1> to vector<1x512xi1>
    %474 = vector.broadcast %473 : vector<1x512xi1> to vector<4x512xi1>
    %475 = vector.broadcast %cst_180 : f32 to vector<4x512xf32>
    %476 = arith.select %474, %453, %475 : vector<4x512xi1>, vector<4x512xf32>
    %477 = vector.extract_strided_slice %263 {offsets = [0, 17], sizes = [4, 495], strides = [1, 1]} : vector<4x512xf32> to vector<4x495xf32>
    %cst_181 = arith.constant 0.000000e+00 : f32
    %478 = vector.broadcast %cst_181 : f32 to vector<4x17xf32>
    %479 = tpu.concatenate %477, %478 in 1 : vector<4x495xf32>, vector<4x17xf32> -> vector<4x512xf32>
    %c1_i32_182 = arith.constant 1 : i32
    %480 = vector.broadcast %c1_i32_182 : i32 to vector<1x512xi32>
    %481 = arith.addi %271, %480 : vector<1x512xi32>
    %c0_i32_183 = arith.constant 0 : i32
    %482 = vector.broadcast %c0_i32_183 : i32 to vector<1x512xi32>
    %483 = arith.cmpi sge, %481, %482 : vector<1x512xi32>
    %c1_i32_184 = arith.constant 1 : i32
    %484 = vector.broadcast %c1_i32_184 : i32 to vector<1x512xi32>
    %485 = arith.addi %271, %484 : vector<1x512xi32>
    %c16_i32_185 = arith.constant 16 : i32
    %486 = vector.broadcast %c16_i32_185 : i32 to vector<1x512xi32>
    %487 = arith.cmpi slt, %485, %486 : vector<1x512xi32>
    %488 = arith.andi %483, %487 : vector<1x512xi1>
    %c1_i32_186 = arith.constant 1 : i32
    %489 = vector.broadcast %c1_i32_186 : i32 to vector<1x512xi32>
    %490 = arith.addi %267, %489 : vector<1x512xi32>
    %c0_i32_187 = arith.constant 0 : i32
    %491 = vector.broadcast %c0_i32_187 : i32 to vector<1x512xi32>
    %492 = arith.cmpi sge, %490, %491 : vector<1x512xi32>
    %493 = arith.andi %488, %492 : vector<1x512xi1>
    %c1_i32_188 = arith.constant 1 : i32
    %494 = vector.broadcast %c1_i32_188 : i32 to vector<1x512xi32>
    %495 = arith.addi %267, %494 : vector<1x512xi32>
    %c16_i32_189 = arith.constant 16 : i32
    %496 = vector.broadcast %c16_i32_189 : i32 to vector<1x512xi32>
    %497 = arith.cmpi slt, %495, %496 : vector<1x512xi32>
    %498 = arith.andi %493, %497 : vector<1x512xi1>
    %cst_190 = arith.constant 0.000000e+00 : f32
    %499 = vector.shape_cast %498 : vector<1x512xi1> to vector<1x512xi1>
    %500 = vector.broadcast %499 : vector<1x512xi1> to vector<4x512xi1>
    %501 = vector.broadcast %cst_190 : f32 to vector<4x512xf32>
    %502 = arith.select %500, %479, %501 : vector<4x512xi1>, vector<4x512xf32>
    %503 = tpu.concatenate %297, %323, %349, %375, %398, %424, %450, %476, %502 in 0 : vector<4x512xf32>, vector<4x512xf32>, vector<4x512xf32>, vector<4x512xf32>, vector<4x512xf32>, vector<4x512xf32>, vector<4x512xf32>, vector<4x512xf32>, vector<4x512xf32> -> vector<36x512xf32>
    %504 = arith.truncf %503 : vector<36x512xf32> to vector<36x512xbf16>
    %cst_191 = arith.constant dense<0.000000e+00> : vector<4x512xf32>
    %505 = tpu.matmul %264, %504, %cst_191 {dimension_numbers = #tpu.dot_dimension_numbers<[1], [0], [0], [1], [0, 0, 1, 1], [], []>} : vector<4x36xbf16>, vector<36x512xbf16>, vector<4x512xf32> -> vector<4x512xf32>
    %506 = vector.extract_strided_slice %243 {offsets = [4, 0], sizes = [4, 512], strides = [1, 1]} : vector<8x512xf32> to vector<4x512xf32>
    %507 = tpu.concatenate %506, %505 in 1 : vector<4x512xf32>, vector<4x512xf32> -> vector<4x1024xf32>
    %cst_192 = arith.constant 0.000000e+00 : f32
    %508 = vector.broadcast %cst_192 : f32 to vector<4x1024xf32>
    %509 = arith.cmpf oge, %507, %508 : vector<4x1024xf32>
    %cst_193 = arith.constant 2.000000e-01 : f32
    %510 = vector.broadcast %cst_193 : f32 to vector<4x1024xf32>
    %511 = arith.mulf %510, %507 : vector<4x1024xf32>
    %512 = arith.select %509, %507, %511 : vector<4x1024xi1>, vector<4x1024xf32>
    %c0_194 = arith.constant 0 : index
    %c0_195 = arith.constant 0 : index
    %513 = vector.load %arg6[%c0_194, %c0_195] : memref<1x4xf32, #tpu.memory_space<vmem>>, vector<1x4xf32>
    %514 = vector.extract_strided_slice %512 {offsets = [0, 0], sizes = [4, 256], strides = [1, 1]} : vector<4x1024xf32> to vector<4x256xf32>
    %cst_196 = arith.constant dense<0.000000e+00> : vector<4xf32>
    %515 = vector.multi_reduction <add>, %514, %cst_196 [1] : vector<4x256xf32> to vector<4xf32>
    %516 = vector.shape_cast %515 : vector<4xf32> to vector<4x1xf32>
    %517 = vector.extract_strided_slice %512 {offsets = [0, 256], sizes = [4, 256], strides = [1, 1]} : vector<4x1024xf32> to vector<4x256xf32>
    %cst_197 = arith.constant dense<0.000000e+00> : vector<4xf32>
    %518 = vector.multi_reduction <add>, %517, %cst_197 [1] : vector<4x256xf32> to vector<4xf32>
    %519 = vector.shape_cast %518 : vector<4xf32> to vector<4x1xf32>
    %520 = vector.extract_strided_slice %512 {offsets = [0, 512], sizes = [4, 256], strides = [1, 1]} : vector<4x1024xf32> to vector<4x256xf32>
    %cst_198 = arith.constant dense<0.000000e+00> : vector<4xf32>
    %521 = vector.multi_reduction <add>, %520, %cst_198 [1] : vector<4x256xf32> to vector<4xf32>
    %522 = vector.shape_cast %521 : vector<4xf32> to vector<4x1xf32>
    %523 = vector.extract_strided_slice %512 {offsets = [0, 768], sizes = [4, 256], strides = [1, 1]} : vector<4x1024xf32> to vector<4x256xf32>
    %cst_199 = arith.constant dense<0.000000e+00> : vector<4xf32>
    %524 = vector.multi_reduction <add>, %523, %cst_199 [1] : vector<4x256xf32> to vector<4xf32>
    %525 = vector.shape_cast %524 : vector<4xf32> to vector<4x1xf32>
    %526 = tpu.concatenate %516, %519, %522, %525 in 1 : vector<4x1xf32>, vector<4x1xf32>, vector<4x1xf32>, vector<4x1xf32> -> vector<4x4xf32>
    %cst_200 = arith.constant 3.906250e-03 : f32
    %527 = vector.broadcast %cst_200 : f32 to vector<4x4xf32>
    %528 = arith.mulf %526, %527 : vector<4x4xf32>
    %cst_201 = arith.constant dense<0.000000e+00> : vector<1x4xf32>
    %529 = tpu.matmul %513, %528, %cst_201 {dimension_numbers = #tpu.dot_dimension_numbers<[1], [0], [0], [1], [0, 0, 1, 1], [], []>} : vector<1x4xf32>, vector<4x4xf32>, vector<1x4xf32> -> vector<1x4xf32>
    %c0_202 = arith.constant 0 : index
    %c0_203 = arith.constant 0 : index
    %530 = vector.load %arg7[%c0_202, %c0_203] : memref<1x4xf32, #tpu.memory_space<vmem>>, vector<1x4xf32>
    tpu.vector_store %arg7[%c0_202, %c0_203], %529 {strides = array<i32>} : memref<1x4xf32, #tpu.memory_space<vmem>>, vector<1x4xf32>,
    return
  }
}

</mosaic_0001>

<llo_original>
// kernel: _lambda_.1
$region0: #{_lambda_.1}
  #allocation0 [shape = 'u32[]', space=smem, size = 0x4, offset = 0x4, fixed_abs, tag = 'smem constant byte address 0x4 - core index']
  #allocation1 [shape = 'u32[72,128]{1,0:T(1,128)}', space=vmem, size = 0x9000, scoped, tag = 'internal scratch']
  %s0 = inlined_call_operand.vmem [shape: f32[4,512], index: 0, kind: input, shape index: {}]
  %s1 = inlined_call_operand.vmem [shape: f32[4,512], index: 1, kind: input, shape index: {}]
  %s2 = inlined_call_operand.vmem [shape: f32[4,512], index: 2, kind: input, shape index: {}]
  %s3 = inlined_call_operand.vmem [shape: f32[8,2], index: 3, kind: input, shape index: {}]
  %s4 = inlined_call_operand.vmem [shape: f32[4,8], index: 4, kind: input, shape index: {}]
  %s5 = inlined_call_operand.vmem [shape: bf16[8,36], index: 5, kind: input, shape index: {}]
  %s6 = inlined_call_operand.vmem [shape: f32[1,4], index: 6, kind: input, shape index: {}]
  %s7 = inlined_call_operand.vmem [shape: f32[1,4], index: 7, kind: output, shape index: {}]
  %s8 = sld [smem:[#allocation0]]
  $region38: #{_lambda_.1} parent=0
    _
  %s10 = ssub.s32 1, %s8
  %s11 = scalar_select 0, %s10, %s8
  // Predicated region
  $region2: #{_lambda_.1} parent=0 // pred_check
    _
  $region3: #{_lambda_.1} parent=0 // pred_check_branch
    %13 = sbr.rel (0) target = $region5
  $region4: #{_lambda_.1} parent=0 // pred_region
    _
  $region5: #{_lambda_.1} parent=0 // pred_fallthru
    _
  // Predicated region
  $region6: #{_lambda_.1} parent=0 // pred_check
    _
  $region7: #{_lambda_.1} parent=0 // pred_check_branch
    %15 = sbr.rel (0) target = $region9
  $region8: #{_lambda_.1} parent=0 // pred_region
    _
  $region9: #{_lambda_.1} parent=0 // pred_fallthru
    _
  // Predicated region
  $region10: #{_lambda_.1} parent=0 // pred_check
    _
  $region11: #{_lambda_.1} parent=0 // pred_check_branch
    %17 = sbr.rel (0) target = $region13
  $region12: #{_lambda_.1} parent=0 // pred_region
    _
  $region13: #{_lambda_.1} parent=0 // pred_fallthru
    _
  // Predicated region
  $region14: #{_lambda_.1} parent=0 // pred_check
    _
  $region15: #{_lambda_.1} parent=0 // pred_check_branch
    %19 = sbr.rel (0) target = $region17
  $region16: #{_lambda_.1} parent=0 // pred_region
    _
  $region17: #{_lambda_.1} parent=0 // pred_fallthru
    _
  // Predicated region
  $region18: #{_lambda_.1} parent=0 // pred_check
    _
  $region19: #{_lambda_.1} parent=0 // pred_check_branch
    %21 = sbr.rel (0) target = $region21
  $region20: #{_lambda_.1} parent=0 // pred_region
    _
  $region21: #{_lambda_.1} parent=0 // pred_fallthru
    _
  // Predicated region
  $region22: #{_lambda_.1} parent=0 // pred_check
    _
  $region23: #{_lambda_.1} parent=0 // pred_check_branch
    %23 = sbr.rel (0) target = $region25
  $region24: #{_lambda_.1} parent=0 // pred_region
    _
  $region25: #{_lambda_.1} parent=0 // pred_fallthru
    _
  // Predicated region
  $region26: #{_lambda_.1} parent=0 // pred_check
    _
  $region27: #{_lambda_.1} parent=0 // pred_check_branch
    %25 = sbr.rel (0) target = $region29
  $region28: #{_lambda_.1} parent=0 // pred_region
    _
  $region29: #{_lambda_.1} parent=0 // pred_fallthru
    _
  %v27 = vld [vmem:[%s0] sm:$0xff]
  %v28 = vld [vmem:[%s0 + $0x8] sm:$0xff]
  %v29 = vld [vmem:[%s1] sm:$0xff]
  %v30 = vld [vmem:[%s1 + $0x8] sm:$0xff]
  %v31 = vld [vmem:[%s5] sm:$0xf]
  %v32 = vlaneseq
  %v33 = vand.u32 %v32, 127
  %v34 = vadd.s32 %v33, 128
  %v35 = vadd.s32 %v33, 256
  %v36 = vadd.s32 %v33, 384
  %v37 = vand.u32 %v33, 15
  %v38 = vand.u32 %v34, 15
  %v39 = vand.u32 %v35, 15
  %v40 = vand.u32 %v36, 15
  %v41 = vshra.s32 %v33, 4
  %v42 = vshra.s32 %v34, 4
  %v43 = vshra.s32 %v35, 4
  %v44 = vshra.s32 %v36, 4
  %v45 = vand.u32 %v41, 15
  %v46 = vand.u32 %v42, 15
  %v47 = vand.u32 %v43, 15
  %v48 = vand.u32 %v44, 15
  %51 = vst [vmem:[#allocation1] ss:$2 sm:$0xff] %v27
  %s52 = scalar_lea.vmem [#allocation1], 16
  %53 = vst [vmem:[%s52] ss:$2 sm:$0xff] %v28
  %v54 = vld.sshfl [vmem:[#allocation1] sm:$0xff pattern:$0x75316420]
  %v55 = vld.sshfl [vmem:[#allocation1 + $0x8] sm:$0xff pattern:$0x75316420]
  %v56 = vld.sshfl [vmem:[#allocation1 + $0x10] sm:$0xff pattern:$0x75316420]
  %v57 = vld.sshfl [vmem:[#allocation1 + $0x18] sm:$0xff pattern:$0x75316420]
  %58 = vrot.lane.b32.xlu0 %v54, 17
  %v59 = vpop.permute.xlu0 %58
  %60 = vrot.lane.b32.xlu0 %v55, 17
  %v61 = vpop.permute.xlu0 %60
  %62 = vrot.lane.b32.xlu0 %v56, 17
  %v63 = vpop.permute.xlu0 %62
  %64 = vrot.lane.b32.xlu0 %v57, 17
  %v65 = vpop.permute.xlu0 %64
  %vm66 = vcmask 138240
  %v67 = vsel %vm66, %v59, %v61
  %v68 = vsel %vm66, %v61, %v63
  %v69 = vsel %vm66, %v63, %v65
  %v74 = vsel %vm66, 0.0, %v59
  %v75 = vadd.s32 %v45, 4294967295
  %v76 = vadd.s32 %v46, 4294967295
  %v77 = vadd.s32 %v47, 4294967295
  %v78 = vadd.s32 %v48, 4294967295
  %vm79 = vcmp.ge.s32.totalorder %v75, 0
  %vm80 = vcmp.ge.s32.totalorder %v76, 0
  %vm81 = vcmp.ge.s32.totalorder %v77, 0
  %vm82 = vcmp.ge.s32.totalorder %v78, 0
  %vm83 = vcmp.lt.s32.totalorder %v75, 16
  %vm84 = vcmp.lt.s32.totalorder %v76, 16
  %vm85 = vcmp.lt.s32.totalorder %v77, 16
  %vm86 = vcmp.lt.s32.totalorder %v78, 16
  %vm87 = vmand %vm79, %vm83
  %vm88 = vmand %vm80, %vm84
  %vm89 = vmand %vm81, %vm85
  %vm90 = vmand %vm82, %vm86
  %v91 = vadd.s32 %v37, 4294967295
  %v92 = vadd.s32 %v38, 4294967295
  %v93 = vadd.s32 %v39, 4294967295
  %v94 = vadd.s32 %v40, 4294967295
  %vm95 = vcmp.ge.s32.totalorder %v91, 0
  %vm96 = vcmp.ge.s32.totalorder %v92, 0
  %vm97 = vcmp.ge.s32.totalorder %v93, 0
  %vm98 = vcmp.ge.s32.totalorder %v94, 0
  %vm99 = vmand %vm87, %vm95
  %vm100 = vmand %vm88, %vm96
  %vm101 = vmand %vm89, %vm97
  %vm102 = vmand %vm90, %vm98
  %vm103 = vcmp.lt.s32.totalorder %v91, 16
  %vm104 = vcmp.lt.s32.totalorder %v92, 16
  %vm105 = vcmp.lt.s32.totalorder %v93, 16
  %vm106 = vcmp.lt.s32.totalorder %v94, 16
  %vm107 = vmand %vm99, %vm103
  %vm108 = vmand %vm100, %vm104
  %vm109 = vmand %vm101, %vm105
  %vm110 = vmand %vm102, %vm106
  %v111 = vsel %vm107, 1, 0
  %v112 = vsel %vm108, 1, 0
  %v113 = vsel %vm109, 1, 0
  %v114 = vsel %vm110, 1, 0
  %vm115 = vcmp.eq.s32.totalorder %v111, 1
  %vm116 = vcmp.eq.s32.totalorder %v112, 1
  %vm117 = vcmp.eq.s32.totalorder %v113, 1
  %vm118 = vcmp.eq.s32.totalorder %v114, 1
  %v119 = vsel %vm115, %v74, 0.0
  %v120 = vsel %vm116, %v67, 0.0
  %v121 = vsel %vm117, %v68, 0.0
  %v122 = vsel %vm118, %v69, 0.0
  %123 = vst [vmem:[#allocation1] ss:$2 sm:$0xff] %v27
  %s124 = scalar_lea.vmem [#allocation1], 16
  %125 = vst [vmem:[%s124] ss:$2 sm:$0xff] %v28
  %v126 = vld.sshfl [vmem:[#allocation1] sm:$0xff pattern:$0x75316420]
  %v127 = vld.sshfl [vmem:[#allocation1 + $0x8] sm:$0xff pattern:$0x75316420]
  %v128 = vld.sshfl [vmem:[#allocation1 + $0x10] sm:$0xff pattern:$0x75316420]
  %v129 = vld.sshfl [vmem:[#allocation1 + $0x18] sm:$0xff pattern:$0x75316420]
  %130 = vrot.lane.b32.xlu0 %v126, 16
  %v131 = vpop.permute.xlu0 %130
  %132 = vrot.lane.b32.xlu0 %v127, 16
  %v133 = vpop.permute.xlu0 %132
  %134 = vrot.lane.b32.xlu0 %v128, 16
  %v135 = vpop.permute.xlu0 %134
  %136 = vrot.lane.b32.xlu0 %v129, 16
  %v137 = vpop.permute.xlu0 %136
  %vm138 = vcmask 130048
  %v139 = vsel %vm138, %v131, %v133
  %v140 = vsel %vm138, %v133, %v135
  %v141 = vsel %vm138, %v135, %v137
  %v146 = vsel %vm138, 0.0, %v131
  %vm147 = vcmp.ge.s32.totalorder %v37, 0
  %vm148 = vcmp.ge.s32.totalorder %v38, 0
  %vm149 = vcmp.ge.s32.totalorder %v39, 0
  %vm150 = vcmp.ge.s32.totalorder %v40, 0
  %vm151 = vmand %vm87, %vm147
  %vm152 = vmand %vm88, %vm148
  %vm153 = vmand %vm89, %vm149
  %vm154 = vmand %vm90, %vm150
  %vm155 = vcmp.lt.s32.totalorder %v37, 16
  %vm156 = vcmp.lt.s32.totalorder %v38, 16
  %vm157 = vcmp.lt.s32.totalorder %v39, 16
  %vm158 = vcmp.lt.s32.totalorder %v40, 16
  %vm159 = vmand %vm151, %vm155
  %vm160 = vmand %vm152, %vm156
  %vm161 = vmand %vm153, %vm157
  %vm162 = vmand %vm154, %vm158
  %v163 = vsel %vm159, 1, 0
  %v164 = vsel %vm160, 1, 0
  %v165 = vsel %vm161, 1, 0
  %v166 = vsel %vm162, 1, 0
  %vm167 = vcmp.eq.s32.totalorder %v163, 1
  %vm168 = vcmp.eq.s32.totalorder %v164, 1
  %vm169 = vcmp.eq.s32.totalorder %v165, 1
  %vm170 = vcmp.eq.s32.totalorder %v166, 1
  %v171 = vsel %vm167, %v146, 0.0
  %v172 = vsel %vm168, %v139, 0.0
  %v173 = vsel %vm169, %v140, 0.0
  %v174 = vsel %vm170, %v141, 0.0
  %175 = vst [vmem:[#allocation1] ss:$2 sm:$0xff] %v27
  %s176 = scalar_lea.vmem [#allocation1], 16
  %177 = vst [vmem:[%s176] ss:$2 sm:$0xff] %v28
  %v178 = vld.sshfl [vmem:[#allocation1] sm:$0xff pattern:$0x75316420]
  %v179 = vld.sshfl [vmem:[#allocation1 + $0x8] sm:$0xff pattern:$0x75316420]
  %v180 = vld.sshfl [vmem:[#allocation1 + $0x10] sm:$0xff pattern:$0x75316420]
  %v181 = vld.sshfl [vmem:[#allocation1 + $0x18] sm:$0xff pattern:$0x75316420]
  %182 = vrot.lane.b32.xlu0 %v178, 15
  %v183 = vpop.permute.xlu0 %182
  %184 = vrot.lane.b32.xlu0 %v179, 15
  %v185 = vpop.permute.xlu0 %184
  %186 = vrot.lane.b32.xlu0 %v180, 15
  %v187 = vpop.permute.xlu0 %186
  %188 = vrot.lane.b32.xlu0 %v181, 15
  %v189 = vpop.permute.xlu0 %188
  %vm190 = vcmask 121856
  %v191 = vsel %vm190, %v183, %v185
  %v192 = vsel %vm190, %v185, %v187
  %v193 = vsel %vm190, %v187, %v189
  %v198 = vsel %vm190, 0.0, %v183
  %v199 = vadd.s32 %v37, 1
  %v200 = vadd.s32 %v38, 1
  %v201 = vadd.s32 %v39, 1
  %v202 = vadd.s32 %v40, 1
  %vm203 = vcmp.ge.s32.totalorder %v199, 0
  %vm204 = vcmp.ge.s32.totalorder %v200, 0
  %vm205 = vcmp.ge.s32.totalorder %v201, 0
  %vm206 = vcmp.ge.s32.totalorder %v202, 0
  %vm207 = vmand %vm87, %vm203
  %vm208 = vmand %vm88, %vm204
  %vm209 = vmand %vm89, %vm205
  %vm210 = vmand %vm90, %vm206
  %vm211 = vcmp.lt.s32.totalorder %v199, 16
  %vm212 = vcmp.lt.s32.totalorder %v200, 16
  %vm213 = vcmp.lt.s32.totalorder %v201, 16
  %vm214 = vcmp.lt.s32.totalorder %v202, 16
  %vm215 = vmand %vm207, %vm211
  %vm216 = vmand %vm208, %vm212
  %vm217 = vmand %vm209, %vm213
  %vm218 = vmand %vm210, %vm214
  %v219 = vsel %vm215, 1, 0
  %v220 = vsel %vm216, 1, 0
  %v221 = vsel %vm217, 1, 0
  %v222 = vsel %vm218, 1, 0
  %vm223 = vcmp.eq.s32.totalorder %v219, 1
  %vm224 = vcmp.eq.s32.totalorder %v220, 1
  %vm225 = vcmp.eq.s32.totalorder %v221, 1
  %vm226 = vcmp.eq.s32.totalorder %v222, 1
  %v227 = vsel %vm223, %v198, 0.0
  %v228 = vsel %vm224, %v191, 0.0
  %v229 = vsel %vm225, %v192, 0.0
  %v230 = vsel %vm226, %v193, 0.0
  %231 = vst [vmem:[#allocation1] ss:$2 sm:$0xff] %v27
  %s232 = scalar_lea.vmem [#allocation1], 16
  %233 = vst [vmem:[%s232] ss:$2 sm:$0xff] %v28
  %v234 = vld.sshfl [vmem:[#allocation1] sm:$0xff pattern:$0x75316420]
  %v235 = vld.sshfl [vmem:[#allocation1 + $0x8] sm:$0xff pattern:$0x75316420]
  %v236 = vld.sshfl [vmem:[#allocation1 + $0x10] sm:$0xff pattern:$0x75316420]
  %v237 = vld.sshfl [vmem:[#allocation1 + $0x18] sm:$0xff pattern:$0x75316420]
  %238 = vrot.lane.b32.xlu0 %v234, 1
  %v239 = vpop.permute.xlu0 %238
  %240 = vrot.lane.b32.xlu0 %v235, 1
  %v241 = vpop.permute.xlu0 %240
  %242 = vrot.lane.b32.xlu0 %v236, 1
  %v243 = vpop.permute.xlu0 %242
  %244 = vrot.lane.b32.xlu0 %v237, 1
  %v245 = vpop.permute.xlu0 %244
  %vm246 = vcmask 7168
  %v247 = vsel %vm246, %v239, %v241
  %v248 = vsel %vm246, %v241, %v243
  %v249 = vsel %vm246, %v243, %v245
  %v254 = vsel %vm246, 0.0, %v239
  %vm255 = vcmp.ge.s32.totalorder %v45, 0
  %vm256 = vcmp.ge.s32.totalorder %v46, 0
  %vm257 = vcmp.ge.s32.totalorder %v47, 0
  %vm258 = vcmp.ge.s32.totalorder %v48, 0
  %vm259 = vcmp.lt.s32.totalorder %v45, 16
  %vm260 = vcmp.lt.s32.totalorder %v46, 16
  %vm261 = vcmp.lt.s32.totalorder %v47, 16
  %vm262 = vcmp.lt.s32.totalorder %v48, 16
  %vm263 = vmand %vm255, %vm259
  %vm264 = vmand %vm256, %vm260
  %vm265 = vmand %vm257, %vm261
  %vm266 = vmand %vm258, %vm262
  %vm267 = vmand %vm263, %vm95
  %vm268 = vmand %vm264, %vm96
  %vm269 = vmand %vm265, %vm97
  %vm270 = vmand %vm266, %vm98
  %vm271 = vmand %vm267, %vm103
  %vm272 = vmand %vm268, %vm104
  %vm273 = vmand %vm269, %vm105
  %vm274 = vmand %vm270, %vm106
  %v275 = vsel %vm271, 1, 0
  %v276 = vsel %vm272, 1, 0
  %v277 = vsel %vm273, 1, 0
  %v278 = vsel %vm274, 1, 0
  %vm279 = vcmp.eq.s32.totalorder %v275, 1
  %vm280 = vcmp.eq.s32.totalorder %v276, 1
  %vm281 = vcmp.eq.s32.totalorder %v277, 1
  %vm282 = vcmp.eq.s32.totalorder %v278, 1
  %v283 = vsel %vm279, %v254, 0.0
  %v284 = vsel %vm280, %v247, 0.0
  %v285 = vsel %vm281, %v248, 0.0
  %v286 = vsel %vm282, %v249, 0.0
  %vm287 = vmand %vm263, %vm147
  %vm288 = vmand %vm264, %vm148
  %vm289 = vmand %vm265, %vm149
  %vm290 = vmand %vm266, %vm150
  %vm291 = vmand %vm287, %vm155
  %vm292 = vmand %vm288, %vm156
  %vm293 = vmand %vm289, %vm157
  %vm294 = vmand %vm290, %vm158
  %v295 = vsel %vm291, 1, 0
  %v296 = vsel %vm292, 1, 0
  %v297 = vsel %vm293, 1, 0
  %v298 = vsel %vm294, 1, 0
  %vm299 = vcmp.eq.s32.totalorder %v295, 1
  %vm300 = vcmp.eq.s32.totalorder %v296, 1
  %vm301 = vcmp.eq.s32.totalorder %v297, 1
  %vm302 = vcmp.eq.s32.totalorder %v298, 1
  %303 = vst [vmem:[#allocation1] ss:$2 sm:$0xff] %v27
  %s304 = scalar_lea.vmem [#allocation1], 16
  %305 = vst [vmem:[%s304] ss:$2 sm:$0xff] %v28
  %v306 = vld.sshfl [vmem:[#allocation1] sm:$0xff pattern:$0x75316420]
  %v307 = vld.sshfl [vmem:[#allocation1 + $0x8] sm:$0xff pattern:$0x75316420]
  %v308 = vld.sshfl [vmem:[#allocation1 + $0x10] sm:$0xff pattern:$0x75316420]
  %v309 = vld.sshfl [vmem:[#allocation1 + $0x18] sm:$0xff pattern:$0x75316420]
  %v314 = vsel %vm299, %v306, 0.0
  %v315 = vsel %vm300, %v307, 0.0
  %v316 = vsel %vm301, %v308, 0.0
  %v317 = vsel %vm302, %v309, 0.0
  %318 = vst [vmem:[#allocation1] ss:$2 sm:$0xff] %v27
  %s319 = scalar_lea.vmem [#allocation1], 16
  %320 = vst [vmem:[%s319] ss:$2 sm:$0xff] %v28
  %v321 = vld.sshfl [vmem:[#allocation1] sm:$0xff pattern:$0x75316420]
  %v322 = vld.sshfl [vmem:[#allocation1 + $0x8] sm:$0xff pattern:$0x75316420]
  %v323 = vld.sshfl [vmem:[#allocation1 + $0x10] sm:$0xff pattern:$0x75316420]
  %v324 = vld.sshfl [vmem:[#allocation1 + $0x18] sm:$0xff pattern:$0x75316420]
  %325 = vrot.lane.b32.xlu0 %v321, 127
  %v326 = vpop.permute.xlu0 %325
  %327 = vrot.lane.b32.xlu0 %v322, 127
  %v328 = vpop.permute.xlu0 %327
  %329 = vrot.lane.b32.xlu0 %v323, 127
  %v330 = vpop.permute.xlu0 %329
  %331 = vrot.lane.b32.xlu0 %v324, 127
  %v332 = vpop.permute.xlu0 %331
  %vm333 = vcmask 1039360
  %v334 = vsel %vm333, %v326, %v328
  %v335 = vsel %vm333, %v328, %v330
  %v336 = vsel %vm333, %v330, %v332
  %v341 = vsel %vm333, %v332, 0.0
  %vm342 = vmand %vm263, %vm203
  %vm343 = vmand %vm264, %vm204
  %vm344 = vmand %vm265, %vm205
  %vm345 = vmand %vm266, %vm206
  %vm346 = vmand %vm342, %vm211
  %vm347 = vmand %vm343, %vm212
  %vm348 = vmand %vm344, %vm213
  %vm349 = vmand %vm345, %vm214
  %v350 = vsel %vm346, 1, 0
  %v351 = vsel %vm347, 1, 0
  %v352 = vsel %vm348, 1, 0
  %v353 = vsel %vm349, 1, 0
  %vm354 = vcmp.eq.s32.totalorder %v350, 1
  %vm355 = vcmp.eq.s32.totalorder %v351, 1
  %vm356 = vcmp.eq.s32.totalorder %v352, 1
  %vm357 = vcmp.eq.s32.totalorder %v353, 1
  %v358 = vsel %vm354, %v334, 0.0
  %v359 = vsel %vm355, %v335, 0.0
  %v360 = vsel %vm356, %v336, 0.0
  %v361 = vsel %vm357, %v341, 0.0
  %362 = vst [vmem:[#allocation1] ss:$2 sm:$0xff] %v27
  %s363 = scalar_lea.vmem [#allocation1], 16
  %364 = vst [vmem:[%s363] ss:$2 sm:$0xff] %v28
  %v365 = vld.sshfl [vmem:[#allocation1] sm:$0xff pattern:$0x75316420]
  %v366 = vld.sshfl [vmem:[#allocation1 + $0x8] sm:$0xff pattern:$0x75316420]
  %v367 = vld.sshfl [vmem:[#allocation1 + $0x10] sm:$0xff pattern:$0x75316420]
  %v368 = vld.sshfl [vmem:[#allocation1 + $0x18] sm:$0xff pattern:$0x75316420]
  %369 = vrot.lane.b32.xlu0 %v365, 113
  %v370 = vpop.permute.xlu0 %369
  %371 = vrot.lane.b32.xlu0 %v366, 113
  %v372 = vpop.permute.xlu0 %371
  %373 = vrot.lane.b32.xlu0 %v367, 113
  %v374 = vpop.permute.xlu0 %373
  %375 = vrot.lane.b32.xlu0 %v368, 113
  %v376 = vpop.permute.xlu0 %375
  %vm377 = vcmask 924672
  %v378 = vsel %vm377, %v370, %v372
  %v379 = vsel %vm377, %v372, %v374
  %v380 = vsel %vm377, %v374, %v376
  %v385 = vsel %vm377, %v376, 0.0
  %v386 = vadd.s32 %v45, 1
  %v387 = vadd.s32 %v46, 1
  %v388 = vadd.s32 %v47, 1
  %v389 = vadd.s32 %v48, 1
  %vm390 = vcmp.ge.s32.totalorder %v386, 0
  %vm391 = vcmp.ge.s32.totalorder %v387, 0
  %vm392 = vcmp.ge.s32.totalorder %v388, 0
  %vm393 = vcmp.ge.s32.totalorder %v389, 0
  %vm394 = vcmp.lt.s32.totalorder %v386, 16
  %vm395 = vcmp.lt.s32.totalorder %v387, 16
  %vm396 = vcmp.lt.s32.totalorder %v388, 16
  %vm397 = vcmp.lt.s32.totalorder %v389, 16
  %vm398 = vmand %vm390, %vm394
  %vm399 = vmand %vm391, %vm395
  %vm400 = vmand %vm392, %vm396
  %vm401 = vmand %vm393, %vm397
  %vm402 = vmand %vm398, %vm95
  %vm403 = vmand %vm399, %vm96
  %vm404 = vmand %vm400, %vm97
  %vm405 = vmand %vm401, %vm98
  %vm406 = vmand %vm402, %vm103
  %vm407 = vmand %vm403, %vm104
  %vm408 = vmand %vm404, %vm105
  %vm409 = vmand %vm405, %vm106
  %v410 = vsel %vm406, 1, 0
  %v411 = vsel %vm407, 1, 0
  %v412 = vsel %vm408, 1, 0
  %v413 = vsel %vm409, 1, 0
  %vm414 = vcmp.eq.s32.totalorder %v410, 1
  %vm415 = vcmp.eq.s32.totalorder %v411, 1
  %vm416 = vcmp.eq.s32.totalorder %v412, 1
  %vm417 = vcmp.eq.s32.totalorder %v413, 1
  %v418 = vsel %vm414, %v378, 0.0
  %v419 = vsel %vm415, %v379, 0.0
  %v420 = vsel %vm416, %v380, 0.0
  %v421 = vsel %vm417, %v385, 0.0
  %422 = vst [vmem:[#allocation1] ss:$2 sm:$0xff] %v27
  %s423 = scalar_lea.vmem [#allocation1], 16
  %424 = vst [vmem:[%s423] ss:$2 sm:$0xff] %v28
  %v425 = vld.sshfl [vmem:[#allocation1] sm:$0xff pattern:$0x75316420]
  %v426 = vld.sshfl [vmem:[#allocation1 + $0x8] sm:$0xff pattern:$0x75316420]
  %v427 = vld.sshfl [vmem:[#allocation1 + $0x10] sm:$0xff pattern:$0x75316420]
  %v428 = vld.sshfl [vmem:[#allocation1 + $0x18] sm:$0xff pattern:$0x75316420]
  %429 = vrot.lane.b32.xlu0 %v425, 112
  %v430 = vpop.permute.xlu0 %429
  %431 = vrot.lane.b32.xlu0 %v426, 112
  %v432 = vpop.permute.xlu0 %431
  %433 = vrot.lane.b32.xlu0 %v427, 112
  %v434 = vpop.permute.xlu0 %433
  %435 = vrot.lane.b32.xlu0 %v428, 112
  %v436 = vpop.permute.xlu0 %435
  %vm437 = vcmask 916480
  %v438 = vsel %vm437, %v430, %v432
  %v439 = vsel %vm437, %v432, %v434
  %v440 = vsel %vm437, %v434, %v436
  %v445 = vsel %vm437, %v436, 0.0
  %vm446 = vmand %vm398, %vm147
  %vm447 = vmand %vm399, %vm148
  %vm448 = vmand %vm400, %vm149
  %vm449 = vmand %vm401, %vm150
  %vm450 = vmand %vm446, %vm155
  %vm451 = vmand %vm447, %vm156
  %vm452 = vmand %vm448, %vm157
  %vm453 = vmand %vm449, %vm158
  %v454 = vsel %vm450, 1, 0
  %v455 = vsel %vm451, 1, 0
  %v456 = vsel %vm452, 1, 0
  %v457 = vsel %vm453, 1, 0
  %vm458 = vcmp.eq.s32.totalorder %v454, 1
  %vm459 = vcmp.eq.s32.totalorder %v455, 1
  %vm460 = vcmp.eq.s32.totalorder %v456, 1
  %vm461 = vcmp.eq.s32.totalorder %v457, 1
  %v462 = vsel %vm458, %v438, 0.0
  %v463 = vsel %vm459, %v439, 0.0
  %v464 = vsel %vm460, %v440, 0.0
  %v465 = vsel %vm461, %v445, 0.0
  %466 = vst [vmem:[#allocation1] ss:$2 sm:$0xff] %v27
  %s467 = scalar_lea.vmem [#allocation1], 16
  %468 = vst [vmem:[%s467] ss:$2 sm:$0xff] %v28
  %v469 = vld.sshfl [vmem:[#allocation1] sm:$0xff pattern:$0x75316420]
  %v470 = vld.sshfl [vmem:[#allocation1 + $0x8] sm:$0xff pattern:$0x75316420]
  %v471 = vld.sshfl [vmem:[#allocation1 + $0x10] sm:$0xff pattern:$0x75316420]
  %v472 = vld.sshfl [vmem:[#allocation1 + $0x18] sm:$0xff pattern:$0x75316420]
  %473 = vrot.lane.b32.xlu0 %v469, 111
  %v474 = vpop.permute.xlu0 %473
  %475 = vrot.lane.b32.xlu0 %v470, 111
  %v476 = vpop.permute.xlu0 %475
  %477 = vrot.lane.b32.xlu0 %v471, 111
  %v478 = vpop.permute.xlu0 %477
  %479 = vrot.lane.b32.xlu0 %v472, 111
  %v480 = vpop.permute.xlu0 %479
  %vm481 = vcmask 908288
  %v482 = vsel %vm481, %v474, %v476
  %v483 = vsel %vm481, %v476, %v478
  %v484 = vsel %vm481, %v478, %v480
  %v489 = vsel %vm481, %v480, 0.0
  %vm490 = vmand %vm398, %vm203
  %vm491 = vmand %vm399, %vm204
  %vm492 = vmand %vm400, %vm205
  %vm493 = vmand %vm401, %vm206
  %vm494 = vmand %vm490, %vm211
  %vm495 = vmand %vm491, %vm212
  %vm496 = vmand %vm492, %vm213
  %vm497 = vmand %vm493, %vm214
  %v498 = vsel %vm494, 1, 0
  %v499 = vsel %vm495, 1, 0
  %v500 = vsel %vm496, 1, 0
  %v501 = vsel %vm497, 1, 0
  %vm502 = vcmp.eq.s32.totalorder %v498, 1
  %vm503 = vcmp.eq.s32.totalorder %v499, 1
  %vm504 = vcmp.eq.s32.totalorder %v500, 1
  %vm505 = vcmp.eq.s32.totalorder %v501, 1
  %v506 = vsel %vm502, %v482, 0.0
  %v507 = vsel %vm503, %v483, 0.0
  %v508 = vsel %vm504, %v484, 0.0
  %v509 = vsel %vm505, %v489, 0.0
  %v514 = vrot.slane %v171, 4
  %v515 = vrot.slane %v172, 4
  %v516 = vrot.slane %v173, 4
  %v517 = vrot.slane %v174, 4
  %v526 = vrot.slane %v283, 4
  %v527 = vrot.slane %v284, 4
  %v528 = vrot.slane %v285, 4
  %v529 = vrot.slane %v286, 4
  %v538 = vrot.slane %v358, 4
  %v539 = vrot.slane %v359, 4
  %v540 = vrot.slane %v360, 4
  %v541 = vrot.slane %v361, 4
  %v550 = vrot.slane %v462, 4
  %v551 = vrot.slane %v463, 4
  %v552 = vrot.slane %v464, 4
  %v553 = vrot.slane %v465, 4
  %vm558 = vcmask 1043456
  %v559 = vsel %vm558, %v119, %v514
  %v560 = vsel %vm558, %v120, %v515
  %v561 = vsel %vm558, %v121, %v516
  %v562 = vsel %vm558, %v122, %v517
  %v563 = vsel %vm558, %v227, %v526
  %v564 = vsel %vm558, %v228, %v527
  %v565 = vsel %vm558, %v229, %v528
  %v566 = vsel %vm558, %v230, %v529
  %v567 = vsel %vm558, %v314, %v538
  %v568 = vsel %vm558, %v315, %v539
  %v569 = vsel %vm558, %v316, %v540
  %v570 = vsel %vm558, %v317, %v541
  %v571 = vsel %vm558, %v418, %v550
  %v572 = vsel %vm558, %v419, %v551
  %v573 = vsel %vm558, %v420, %v552
  %v574 = vsel %vm558, %v421, %v553
  %v575 = vpack.c.bf16 %v563, %v559
  %v576 = vpack.c.bf16 %v564, %v560
  %v577 = vpack.c.bf16 %v565, %v561
  %v578 = vpack.c.bf16 %v566, %v562
  %v579 = vpack.c.bf16 %v571, %v567
  %v580 = vpack.c.bf16 %v572, %v568
  %v581 = vpack.c.bf16 %v573, %v569
  %v582 = vpack.c.bf16 %v574, %v570
  %v583 = vpack.c.bf16 %v506, %v506
  %v584 = vpack.c.bf16 %v507, %v507
  %v585 = vpack.c.bf16 %v508, %v508
  %v586 = vpack.c.bf16 %v509, %v509
  %vm587 = vcmask 293888
  %v589 = vsel %vm587, %v31, 0
  %vm591 = vcmask 1041408
  %v593 = vsel %vm591, %v583, 0
  %v596 = vsel %vm591, %v584, 0
  %v599 = vsel %vm591, %v585, 0
  %v602 = vsel %vm591, %v586, 0
  %604 = vmatpush.bf16.msra.mxu0 0
  %605 = vmatpush.bf16.msra.mxu0 0
  %606 = vmatpush.bf16.msra.mxu0 0
  %607 = vmatpush.bf16.msra.mxu0 0
  %608 = vmatpush.bf16.msra.mxu0 0
  %609 = vmatpush.bf16.msra.mxu0 %v593
  %610 = vmatpush.bf16.msra.mxu0 %v579
  %611 = vmatpush.bf16.msra.mxu0 %v575
  %612 = vmatmul.bf16.gmra.mxu0 %v589
  %v613 = vpop.f32.mrf.mxu0
  %v614 = vadd.f32 0.0, %v613
  %v615 = vpop.f32.mrf.mxu0
  %616 = vdwg.mxu0
  %617 = vmatpush.bf16.msra.mxu0 0
  %618 = vmatpush.bf16.msra.mxu0 0
  %619 = vmatpush.bf16.msra.mxu0 0
  %620 = vmatpush.bf16.msra.mxu0 0
  %621 = vmatpush.bf16.msra.mxu0 0
  %622 = vmatpush.bf16.msra.mxu0 %v596
  %623 = vmatpush.bf16.msra.mxu0 %v580
  %624 = vmatpush.bf16.msra.mxu0 %v576
  %625 = vmatmul.bf16.gmra.mxu0 %v589
  %v626 = vpop.f32.mrf.mxu0
  %v627 = vadd.f32 0.0, %v626
  %v628 = vpop.f32.mrf.mxu0
  %629 = vdwg.mxu0
  %630 = vmatpush.bf16.msra.mxu0 0
  %631 = vmatpush.bf16.msra.mxu0 0
  %632 = vmatpush.bf16.msra.mxu0 0
  %633 = vmatpush.bf16.msra.mxu0 0
  %634 = vmatpush.bf16.msra.mxu0 0
  %635 = vmatpush.bf16.msra.mxu0 %v599
  %636 = vmatpush.bf16.msra.mxu0 %v581
  %637 = vmatpush.bf16.msra.mxu0 %v577
  %638 = vmatmul.bf16.gmra.mxu0 %v589
  %v639 = vpop.f32.mrf.mxu0
  %v640 = vadd.f32 0.0, %v639
  %v641 = vpop.f32.mrf.mxu0
  %642 = vdwg.mxu0
  %643 = vmatpush.bf16.msra.mxu0 0
  %644 = vmatpush.bf16.msra.mxu0 0
  %645 = vmatpush.bf16.msra.mxu0 0
  %646 = vmatpush.bf16.msra.mxu0 0
  %647 = vmatpush.bf16.msra.mxu0 0
  %648 = vmatpush.bf16.msra.mxu0 %v602
  %649 = vmatpush.bf16.msra.mxu0 %v582
  %650 = vmatpush.bf16.msra.mxu0 %v578
  %651 = vmatmul.bf16.gmra.mxu0 %v589
  %v652 = vpop.f32.mrf.mxu0
  %v653 = vadd.f32 0.0, %v652
  %v654 = vpop.f32.mrf.mxu0
  %655 = vdwg.mxu0
  %v656 = vld [vmem:[%s4] sm:$0xf]
  %v657 = vld [vmem:[%s3] sm:$0xff]
  %vm658 = vcmask 64512
  %v660 = vsel %vm658, %v656, 0
  %662 = vmatpush.msra.mxu0 0.0
  %663 = vmatpush.msra.mxu0 0.0
  %664 = vmatpush.msra.mxu0 0.0
  %665 = vmatpush.msra.mxu0 0.0
  %666 = vmatpush.msra.mxu0 0.0
  %667 = vmatpush.msra.mxu0 0.0
  %668 = vmatpush.msra.mxu0 0.0
  %669 = vmatpush.msra.mxu0 0.0
  %670 = vmatpush.msra.mxu0 0.0
  %671 = vmatpush.msra.mxu0 0.0
  %672 = vmatpush.msra.mxu0 0.0
  %673 = vmatpush.msra.mxu0 0.0
  %674 = vmatpush.msra.mxu0 0.0
  %675 = vmatpush.msra.mxu0 0.0
  %676 = vmatpush.msra.mxu0 0.0
  %677 = vmatpush.msra.mxu0 %v657
  %678 = vmatmul.f32.gmra.mxu0 %v660
  %v679 = vpop.f32.mrf.mxu0
  %v680 = vadd.f32 0.0, %v679
  %681 = vdwg.mxu0
  %683 = vset.pattern.permute.xlu0 0
  %684 = vperm.xlu0 %683, %v680
  %v685 = vpop.permute.xlu0 %684
  %687 = vset.pattern.permute.xlu0 1
  %688 = vperm.xlu0 %687, %v680
  %v689 = vpop.permute.xlu0 %688
  %v691 = vadd.f32 %v614, %v685
  %v692 = vadd.f32 %v627, %v685
  %v693 = vadd.f32 %v640, %v689
  %v694 = vadd.f32 %v653, %v689
  %v695 = vtanh.pop %v691
  %v696 = vtanh.pop %v692
  %v697 = vtanh.pop %v693
  %v698 = vtanh.pop %v694
  %701 = vst [vmem:[#allocation1] ss:$2 sm:$0xff] %v29
  %s702 = scalar_lea.vmem [#allocation1], 16
  %703 = vst [vmem:[%s702] ss:$2 sm:$0xff] %v30
  %v704 = vld.sshfl [vmem:[#allocation1] sm:$0xff pattern:$0x75316420]
  %v705 = vld.sshfl [vmem:[#allocation1 + $0x8] sm:$0xff pattern:$0x75316420]
  %v706 = vld.sshfl [vmem:[#allocation1 + $0x10] sm:$0xff pattern:$0x75316420]
  %v707 = vld.sshfl [vmem:[#allocation1 + $0x18] sm:$0xff pattern:$0x75316420]
  %v712 = vmul.f32 %v695, %v704
  %v713 = vmul.f32 %v696, %v705
  %v714 = vmul.f32 %v697, %v706
  %v715 = vmul.f32 %v698, %v707
  %v716 = vsub.f32 1.0, %v29
  %v717 = vsub.f32 1.0, %v30
  %v718 = vmul.f32 %v27, %v716
  %v719 = vmul.f32 %v28, %v717
  %722 = vst [vmem:[#allocation1] ss:$2 sm:$0xff] %v718
  %s723 = scalar_lea.vmem [#allocation1], 16
  %724 = vst [vmem:[%s723] ss:$2 sm:$0xff] %v719
  %v725 = vld.sshfl [vmem:[#allocation1] sm:$0xff pattern:$0x75316420]
  %v726 = vld.sshfl [vmem:[#allocation1 + $0x8] sm:$0xff pattern:$0x75316420]
  %v727 = vld.sshfl [vmem:[#allocation1 + $0x10] sm:$0xff pattern:$0x75316420]
  %v728 = vld.sshfl [vmem:[#allocation1 + $0x18] sm:$0xff pattern:$0x75316420]
  %v733 = vadd.f32 %v712, %v725
  %v734 = vadd.f32 %v713, %v726
  %v735 = vadd.f32 %v714, %v727
  %v736 = vadd.f32 %v715, %v728
  %v737 = vld [vmem:[%s2] sm:$0xff]
  %v738 = vld [vmem:[%s2 + $0x8] sm:$0xff]
  %741 = vst [vmem:[#allocation1] ss:$2 sm:$0xff] %v737
  %s742 = scalar_lea.vmem [#allocation1], 16
  %743 = vst [vmem:[%s742] ss:$2 sm:$0xff] %v738
  %v744 = vld.sshfl [vmem:[#allocation1] sm:$0xff pattern:$0x75316420]
  %v745 = vld.sshfl [vmem:[#allocation1 + $0x8] sm:$0xff pattern:$0x75316420]
  %v746 = vld.sshfl [vmem:[#allocation1 + $0x10] sm:$0xff pattern:$0x75316420]
  %v747 = vld.sshfl [vmem:[#allocation1 + $0x18] sm:$0xff pattern:$0x75316420]
  %v752 = vmul.f32 %v733, %v744
  %v753 = vmul.f32 %v734, %v745
  %v754 = vmul.f32 %v735, %v746
  %v755 = vmul.f32 %v736, %v747
  %760 = vrot.lane.b32.xlu0 %v752, 17
  %v761 = vpop.permute.xlu0 %760
  %762 = vrot.lane.b32.xlu0 %v753, 17
  %v763 = vpop.permute.xlu0 %762
  %764 = vrot.lane.b32.xlu0 %v754, 17
  %v765 = vpop.permute.xlu0 %764
  %766 = vrot.lane.b32.xlu0 %v755, 17
  %v767 = vpop.permute.xlu0 %766
  %v768 = vsel %vm66, %v761, %v763
  %v769 = vsel %vm66, %v763, %v765
  %v770 = vsel %vm66, %v765, %v767
  %v775 = vsel %vm66, 0.0, %v761
  %v776 = vsel %vm115, %v775, 0.0
  %v777 = vsel %vm116, %v768, 0.0
  %v778 = vsel %vm117, %v769, 0.0
  %v779 = vsel %vm118, %v770, 0.0
  %780 = vrot.lane.b32.xlu0 %v752, 16
  %v781 = vpop.permute.xlu0 %780
  %782 = vrot.lane.b32.xlu0 %v753, 16
  %v783 = vpop.permute.xlu0 %782
  %784 = vrot.lane.b32.xlu0 %v754, 16
  %v785 = vpop.permute.xlu0 %784
  %786 = vrot.lane.b32.xlu0 %v755, 16
  %v787 = vpop.permute.xlu0 %786
  %v788 = vsel %vm138, %v781, %v783
  %v789 = vsel %vm138, %v783, %v785
  %v790 = vsel %vm138, %v785, %v787
  %v795 = vsel %vm138, 0.0, %v781
  %v796 = vsel %vm167, %v795, 0.0
  %v797 = vsel %vm168, %v788, 0.0
  %v798 = vsel %vm169, %v789, 0.0
  %v799 = vsel %vm170, %v790, 0.0
  %800 = vrot.lane.b32.xlu0 %v752, 15
  %v801 = vpop.permute.xlu0 %800
  %802 = vrot.lane.b32.xlu0 %v753, 15
  %v803 = vpop.permute.xlu0 %802
  %804 = vrot.lane.b32.xlu0 %v754, 15
  %v805 = vpop.permute.xlu0 %804
  %806 = vrot.lane.b32.xlu0 %v755, 15
  %v807 = vpop.permute.xlu0 %806
  %v808 = vsel %vm190, %v801, %v803
  %v809 = vsel %vm190, %v803, %v805
  %v810 = vsel %vm190, %v805, %v807
  %v815 = vsel %vm190, 0.0, %v801
  %v816 = vsel %vm223, %v815, 0.0
  %v817 = vsel %vm224, %v808, 0.0
  %v818 = vsel %vm225, %v809, 0.0
  %v819 = vsel %vm226, %v810, 0.0
  %820 = vrot.lane.b32.xlu0 %v752, 1
  %v821 = vpop.permute.xlu0 %820
  %822 = vrot.lane.b32.xlu0 %v753, 1
  %v823 = vpop.permute.xlu0 %822
  %824 = vrot.lane.b32.xlu0 %v754, 1
  %v825 = vpop.permute.xlu0 %824
  %826 = vrot.lane.b32.xlu0 %v755, 1
  %v827 = vpop.permute.xlu0 %826
  %v828 = vsel %vm246, %v821, %v823
  %v829 = vsel %vm246, %v823, %v825
  %v830 = vsel %vm246, %v825, %v827
  %v835 = vsel %vm246, 0.0, %v821
  %v836 = vsel %vm279, %v835, 0.0
  %v837 = vsel %vm280, %v828, 0.0
  %v838 = vsel %vm281, %v829, 0.0
  %v839 = vsel %vm282, %v830, 0.0
  %v840 = vsel %vm299, %v752, 0.0
  %v841 = vsel %vm300, %v753, 0.0
  %v842 = vsel %vm301, %v754, 0.0
  %v843 = vsel %vm302, %v755, 0.0
  %844 = vrot.lane.b32.xlu0 %v752, 127
  %v845 = vpop.permute.xlu0 %844
  %846 = vrot.lane.b32.xlu0 %v753, 127
  %v847 = vpop.permute.xlu0 %846
  %848 = vrot.lane.b32.xlu0 %v754, 127
  %v849 = vpop.permute.xlu0 %848
  %850 = vrot.lane.b32.xlu0 %v755, 127
  %v851 = vpop.permute.xlu0 %850
  %v852 = vsel %vm333, %v845, %v847
  %v853 = vsel %vm333, %v847, %v849
  %v854 = vsel %vm333, %v849, %v851
  %v859 = vsel %vm333, %v851, 0.0
  %v860 = vsel %vm354, %v852, 0.0
  %v861 = vsel %vm355, %v853, 0.0
  %v862 = vsel %vm356, %v854, 0.0
  %v863 = vsel %vm357, %v859, 0.0
  %864 = vrot.lane.b32.xlu0 %v752, 113
  %v865 = vpop.permute.xlu0 %864
  %866 = vrot.lane.b32.xlu0 %v753, 113
  %v867 = vpop.permute.xlu0 %866
  %868 = vrot.lane.b32.xlu0 %v754, 113
  %v869 = vpop.permute.xlu0 %868
  %870 = vrot.lane.b32.xlu0 %v755, 113
  %v871 = vpop.permute.xlu0 %870
  %v872 = vsel %vm377, %v865, %v867
  %v873 = vsel %vm377, %v867, %v869
  %v874 = vsel %vm377, %v869, %v871
  %v879 = vsel %vm377, %v871, 0.0
  %v880 = vsel %vm414, %v872, 0.0
  %v881 = vsel %vm415, %v873, 0.0
  %v882 = vsel %vm416, %v874, 0.0
  %v883 = vsel %vm417, %v879, 0.0
  %884 = vrot.lane.b32.xlu0 %v752, 112
  %v885 = vpop.permute.xlu0 %884
  %886 = vrot.lane.b32.xlu0 %v753, 112
  %v887 = vpop.permute.xlu0 %886
  %888 = vrot.lane.b32.xlu0 %v754, 112
  %v889 = vpop.permute.xlu0 %888
  %890 = vrot.lane.b32.xlu0 %v755, 112
  %v891 = vpop.permute.xlu0 %890
  %v892 = vsel %vm437, %v885, %v887
  %v893 = vsel %vm437, %v887, %v889
  %v894 = vsel %vm437, %v889, %v891
  %v899 = vsel %vm437, %v891, 0.0
  %v900 = vsel %vm458, %v892, 0.0
  %v901 = vsel %vm459, %v893, 0.0
  %v902 = vsel %vm460, %v894, 0.0
  %v903 = vsel %vm461, %v899, 0.0
  %904 = vrot.lane.b32.xlu0 %v752, 111
  %v905 = vpop.permute.xlu0 %904
  %906 = vrot.lane.b32.xlu0 %v753, 111
  %v907 = vpop.permute.xlu0 %906
  %908 = vrot.lane.b32.xlu0 %v754, 111
  %v909 = vpop.permute.xlu0 %908
  %910 = vrot.lane.b32.xlu0 %v755, 111
  %v911 = vpop.permute.xlu0 %910
  %v912 = vsel %vm481, %v905, %v907
  %v913 = vsel %vm481, %v907, %v909
  %v914 = vsel %vm481, %v909, %v911
  %v919 = vsel %vm481, %v911, 0.0
  %v920 = vsel %vm502, %v912, 0.0
  %v921 = vsel %vm503, %v913, 0.0
  %v922 = vsel %vm504, %v914, 0.0
  %v923 = vsel %vm505, %v919, 0.0
  %v928 = vrot.slane %v796, 4
  %v929 = vrot.slane %v797, 4
  %v930 = vrot.slane %v798, 4
  %v931 = vrot.slane %v799, 4
  %v940 = vrot.slane %v836, 4
  %v941 = vrot.slane %v837, 4
  %v942 = vrot.slane %v838, 4
  %v943 = vrot.slane %v839, 4
  %v952 = vrot.slane %v860, 4
  %v953 = vrot.slane %v861, 4
  %v954 = vrot.slane %v862, 4
  %v955 = vrot.slane %v863, 4
  %v964 = vrot.slane %v900, 4
  %v965 = vrot.slane %v901, 4
  %v966 = vrot.slane %v902, 4
  %v967 = vrot.slane %v903, 4
  %v972 = vsel %vm558, %v776, %v928
  %v973 = vsel %vm558, %v777, %v929
  %v974 = vsel %vm558, %v778, %v930
  %v975 = vsel %vm558, %v779, %v931
  %v976 = vsel %vm558, %v816, %v940
  %v977 = vsel %vm558, %v817, %v941
  %v978 = vsel %vm558, %v818, %v942
  %v979 = vsel %vm558, %v819, %v943
  %v980 = vsel %vm558, %v840, %v952
  %v981 = vsel %vm558, %v841, %v953
  %v982 = vsel %vm558, %v842, %v954
  %v983 = vsel %vm558, %v843, %v955
  %v984 = vsel %vm558, %v880, %v964
  %v985 = vsel %vm558, %v881, %v965
  %v986 = vsel %vm558, %v882, %v966
  %v987 = vsel %vm558, %v883, %v967
  %v988 = vpack.c.bf16 %v976, %v972
  %v989 = vpack.c.bf16 %v977, %v973
  %v990 = vpack.c.bf16 %v978, %v974
  %v991 = vpack.c.bf16 %v979, %v975
  %v992 = vpack.c.bf16 %v984, %v980
  %v993 = vpack.c.bf16 %v985, %v981
  %v994 = vpack.c.bf16 %v986, %v982
  %v995 = vpack.c.bf16 %v987, %v983
  %v996 = vpack.c.bf16 %v920, %v920
  %v997 = vpack.c.bf16 %v921, %v921
  %v998 = vpack.c.bf16 %v922, %v922
  %v999 = vpack.c.bf16 %v923, %v923
  %v1001 = vunpack.c.l.b16 %v31
  %v1002 = vpack.c.b16 %v1001, %v1001
  %v1003 = vrot.slane %v1002, 2
  %v1005 = vsel %vm587, %v1003, 0
  %v1008 = vsel %vm591, %v996, 0
  %v1011 = vsel %vm591, %v997, 0
  %v1014 = vsel %vm591, %v998, 0
  %v1017 = vsel %vm591, %v999, 0
  %1019 = vmatpush.bf16.msra.mxu0 0
  %1020 = vmatpush.bf16.msra.mxu0 0
  %1021 = vmatpush.bf16.msra.mxu0 0
  %1022 = vmatpush.bf16.msra.mxu0 0
  %1023 = vmatpush.bf16.msra.mxu0 0
  %1024 = vmatpush.bf16.msra.mxu0 %v1008
  %1025 = vmatpush.bf16.msra.mxu0 %v992
  %1026 = vmatpush.bf16.msra.mxu0 %v988
  %1027 = vmatmul.bf16.gmra.mxu0 %v1005
  %v1028 = vpop.f32.mrf.mxu0
  %v1029 = vadd.f32 0.0, %v1028
  %v1030 = vpop.f32.mrf.mxu0
  %1031 = vdwg.mxu0
  %1032 = vmatpush.bf16.msra.mxu0 0
  %1033 = vmatpush.bf16.msra.mxu0 0
  %1034 = vmatpush.bf16.msra.mxu0 0
  %1035 = vmatpush.bf16.msra.mxu0 0
  %1036 = vmatpush.bf16.msra.mxu0 0
  %1037 = vmatpush.bf16.msra.mxu0 %v1011
  %1038 = vmatpush.bf16.msra.mxu0 %v993
  %1039 = vmatpush.bf16.msra.mxu0 %v989
  %1040 = vmatmul.bf16.gmra.mxu0 %v1005
  %v1041 = vpop.f32.mrf.mxu0
  %v1042 = vadd.f32 0.0, %v1041
  %v1043 = vpop.f32.mrf.mxu0
  %1044 = vdwg.mxu0
  %1045 = vmatpush.bf16.msra.mxu0 0
  %1046 = vmatpush.bf16.msra.mxu0 0
  %1047 = vmatpush.bf16.msra.mxu0 0
  %1048 = vmatpush.bf16.msra.mxu0 0
  %1049 = vmatpush.bf16.msra.mxu0 0
  %1050 = vmatpush.bf16.msra.mxu0 %v1014
  %1051 = vmatpush.bf16.msra.mxu0 %v994
  %1052 = vmatpush.bf16.msra.mxu0 %v990
  %1053 = vmatmul.bf16.gmra.mxu0 %v1005
  %v1054 = vpop.f32.mrf.mxu0
  %v1055 = vadd.f32 0.0, %v1054
  %v1056 = vpop.f32.mrf.mxu0
  %1057 = vdwg.mxu0
  %1058 = vmatpush.bf16.msra.mxu0 0
  %1059 = vmatpush.bf16.msra.mxu0 0
  %1060 = vmatpush.bf16.msra.mxu0 0
  %1061 = vmatpush.bf16.msra.mxu0 0
  %1062 = vmatpush.bf16.msra.mxu0 0
  %1063 = vmatpush.bf16.msra.mxu0 %v1017
  %1064 = vmatpush.bf16.msra.mxu0 %v995
  %1065 = vmatpush.bf16.msra.mxu0 %v991
  %1066 = vmatmul.bf16.gmra.mxu0 %v1005
  %v1067 = vpop.f32.mrf.mxu0
  %v1068 = vadd.f32 0.0, %v1067
  %v1069 = vpop.f32.mrf.mxu0
  %1070 = vdwg.mxu0
  %v1075 = vrot.slane %v1029, 4
  %v1076 = vrot.slane %v1042, 4
  %v1077 = vrot.slane %v1055, 4
  %v1078 = vrot.slane %v1068, 4
  %vm1083 = vcmp.ge.f32.partialorder %v614, 0.0
  %vm1084 = vcmp.ge.f32.partialorder %v627, 0.0
  %vm1085 = vcmp.ge.f32.partialorder %v640, 0.0
  %vm1086 = vcmp.ge.f32.partialorder %v653, 0.0
  %vm1087 = vcmp.ge.f32.partialorder %v1075, 0.0
  %vm1088 = vcmp.ge.f32.partialorder %v1076, 0.0
  %vm1089 = vcmp.ge.f32.partialorder %v1077, 0.0
  %vm1090 = vcmp.ge.f32.partialorder %v1078, 0.0
  %v1091 = vmul.f32 %v614, 0.2
  %v1092 = vmul.f32 %v627, 0.2
  %v1093 = vmul.f32 %v640, 0.2
  %v1094 = vmul.f32 %v653, 0.2
  %v1095 = vmul.f32 %v1075, 0.2
  %v1096 = vmul.f32 %v1076, 0.2
  %v1097 = vmul.f32 %v1077, 0.2
  %v1098 = vmul.f32 %v1078, 0.2
  %v1099 = vsel %vm1083, %v614, %v1091
  %v1100 = vsel %vm1084, %v627, %v1092
  %v1101 = vsel %vm1085, %v640, %v1093
  %v1102 = vsel %vm1086, %v653, %v1094
  %v1103 = vsel %vm1087, %v1075, %v1095
  %v1104 = vsel %vm1088, %v1076, %v1096
  %v1105 = vsel %vm1089, %v1077, %v1097
  %v1106 = vsel %vm1090, %v1078, %v1098
  %v1107 = vld [vmem:[%s6] sm:$0x1]
  %vm1108 = vcmask 1047556
  %v1109 = vsel %vm1108, %v1099, 0.0
  %v1110 = vsel %vm1108, %v1100, 0.0
  %v1111 = vadd.f32 %v1109, %v1110
  %1112 = vadd.xlane.f32.xlu0 %v1111
  %v1113 = vpop.xlane.xlu0 %1112
  %v1114 = vsel %vm1108, %v1101, 0.0
  %v1115 = vsel %vm1108, %v1102, 0.0
  %v1116 = vadd.f32 %v1114, %v1115
  %1117 = vadd.xlane.f32.xlu0 %v1116
  %v1118 = vpop.xlane.xlu0 %1117
  %v1119 = vsel %vm1108, %v1103, 0.0
  %v1120 = vsel %vm1108, %v1104, 0.0
  %v1121 = vadd.f32 %v1119, %v1120
  %1122 = vadd.xlane.f32.xlu0 %v1121
  %v1123 = vpop.xlane.xlu0 %1122
  %v1124 = vsel %vm1108, %v1105, 0.0
  %v1125 = vsel %vm1108, %v1106, 0.0
  %v1126 = vadd.f32 %v1124, %v1125
  %1127 = vadd.xlane.f32.xlu0 %v1126
  %v1128 = vpop.xlane.xlu0 %1127
  %v1129 = vsel %vm246, %v1113, %v1118
  %vm1130 = vcmask 15360
  %v1131 = vsel %vm1130, %v1129, %v1123
  %vm1132 = vcmask 23552
  %v1133 = vsel %vm1132, %v1131, %v1128
  %v1134 = vmul.f32 %v1133, 0.00390625
  %v1136 = vrot.slane %v1134, 4
  %vm1137 = vcmask 31744
  %v1139 = vsel %vm1137, %v1107, 0
  %v1141 = vsel %vm558, %v1136, 0
  %1143 = vmatpush.msra.mxu0 0.0
  %1144 = vmatpush.msra.mxu0 0.0
  %1145 = vmatpush.msra.mxu0 0.0
  %1146 = vmatpush.msra.mxu0 0.0
  %1147 = vmatpush.msra.mxu0 0.0
  %1148 = vmatpush.msra.mxu0 0.0
  %1149 = vmatpush.msra.mxu0 0.0
  %1150 = vmatpush.msra.mxu0 0.0
  %1151 = vmatpush.msra.mxu0 0.0
  %1152 = vmatpush.msra.mxu0 0.0
  %1153 = vmatpush.msra.mxu0 0.0
  %1154 = vmatpush.msra.mxu0 0.0
  %1155 = vmatpush.msra.mxu0 0.0
  %1156 = vmatpush.msra.mxu0 0.0
  %1157 = vmatpush.msra.mxu0 0.0
  %1158 = vmatpush.msra.mxu0 %v1141
  %1159 = vmatmul.f32.gmra.mxu0 %v1139
  %v1160 = vpop.f32.mrf.mxu0
  %v1161 = vadd.f32 0.0, %v1160
  %1162 = vdwg.mxu0
  %vm1163 = vcmask 24576
  %1164 = vst.msk [vmem:[%s7] sm:$0x1] %vm1163, %v1161
  // Predicated region
  $region30: #{_lambda_.1} parent=0 // pred_check
    _
  $region31: #{_lambda_.1} parent=0 // pred_check_branch
    %1166 = sbr.rel (0) target = $region33
  $region32: #{_lambda_.1} parent=0 // pred_region
    _
  $region33: #{_lambda_.1} parent=0 // pred_fallthru
    _
  // Predicated region
  $region34: #{_lambda_.1} parent=0 // pred_check
    _
  $region35: #{_lambda_.1} parent=0 // pred_check_branch
    %1168 = sbr.rel (0) target = $region37
  $region36: #{_lambda_.1} parent=0 // pred_region
    _
  $region37: #{_lambda_.1} parent=0 // pred_fallthru
    _

</llo_original>
